<compile_context>
chip_gen: v7x
topology: tpu7x:2x2x1
jax: 0.10.0
libtpu: 0.0.40
codegen_flags: <defaults>
</compile_context>

<pallas_src>
import math
import jax
import jax.numpy as jnp
from jax.experimental import pallas as pl
from jax.experimental.pallas import tpu as pltpu

# ----------------------------- config (small, deterministic) -----------------------------
B = 2           # batch
S = 8           # sequence length
H = 32          # hidden size
NH = 2          # attention heads
DH = H // NH    # head dim
I = 64          # intermediate (FFN) size
L = 2           # encoder layers
VOCAB = 100
TYPE_VOCAB = 2
MAX_POS = 16
NUM_CLASSES = 3
LN_EPS = 1e-12
MASK_BIAS = -10000.0   # HF-style additive mask constant (bf16-safe, unlike -1e9)


# ----------------------------- in-kernel helpers -----------------------------
def _ln(z, g, b):
    mu = jnp.mean(z, axis=-1, keepdims=True)
    var = jnp.mean((z - mu) ** 2, axis=-1, keepdims=True)
    return (z - mu) * jax.lax.rsqrt(var + LN_EPS) * g + b


def _gelu(y):
    # TODO(synk): HF BERT uses exact erf-GELU; tanh approximation used here.
    return 0.5 * y * (1.0 + jnp.tanh(0.7978845608028654 * (y + 0.044715 * y * y * y)))


def _mxu_dot(a, b):
    # bf16 MXU operands, f32 accumulation; elementwise math around it stays f32.
    return jnp.dot(a.astype(jnp.bfloat16), b.astype(jnp.bfloat16),
                   preferred_element_type=jnp.float32)


# ----------------------------- fused encoder kernel -----------------------------
def _make_encoder_kernel(num_layers):
    """Embedding LayerNorm + `num_layers` full BERT layers for one batch element."""
    def kernel(emb_ref, mask_ref, embg_ref, embb_ref,
               wqkv_ref, bqkv_ref, wo_ref, bo_ref,
               ln1g_ref, ln1b_ref, w1_ref, b1_ref, w2_ref, b2_ref,
               ln2g_ref, ln2b_ref, o_ref):
        # embeddings LayerNorm
        x = _ln(emb_ref[0], embg_ref[...], embb_ref[...])        # [S, H] f32

        # additive attention bias built in-kernel from raw key mask [1, S]
        bias = (1.0 - mask_ref[0]) * MASK_BIAS                   # [1, S]
        scale = 1.0 / math.sqrt(DH)

        for l in range(num_layers):                              # static unroll
            # fused QKV projection: single MXU matmul
            qkv = _mxu_dot(x, wqkv_ref[l]) + bqkv_ref[l]         # [S, 3H]

            ctx_heads = []
            for h in range(NH):                                  # static unroll (NH tiny)
                qh = qkv[:, h * DH:(h + 1) * DH]                 # [S, DH]
                kh = qkv[:, H + h * DH:H + (h + 1) * DH]         # [S, DH]
                vh = qkv[:, 2 * H + h * DH:2 * H + (h + 1) * DH]
                s = _mxu_dot(qh, kh.T) * scale + bias            # [S, S]
                m = jnp.max(s, axis=-1, keepdims=True)
                e = jnp.exp(s - m)
                p = e * pl.reciprocal(jnp.sum(e, axis=-1, keepdims=True), approx=True)
                ctx_heads.append(_mxu_dot(p, vh))                # [S, DH]
            ctx = jnp.concatenate(ctx_heads, axis=-1)            # [S, H]

            # output projection + residual + LayerNorm
            attn_out = _mxu_dot(ctx, wo_ref[l]) + bo_ref[l]
            h1 = _ln(x + attn_out, ln1g_ref[l], ln1b_ref[l])

            # FFN + residual + LayerNorm
            ff = _gelu(_mxu_dot(h1, w1_ref[l]) + b1_ref[l])
            ff = _mxu_dot(ff, w2_ref[l]) + b2_ref[l]
            x = _ln(h1 + ff, ln2g_ref[l], ln2b_ref[l])

        o_ref[0] = x.astype(o_ref.dtype)
    return kernel


def bert_encoder(emb, key_mask, emb_ln_g, emb_ln_b, stack):
    """emb: [B, S, H] f32; key_mask: [B, 1, S] f32 (1 = keep, 0 = pad).
    `stack` holds per-layer weights stacked along a leading L axis."""
    Bq, Sq, Hd = emb.shape

    def full(shape):
        return pl.BlockSpec(shape, lambda b, _n=len(shape): (0,) * _n)

    weight_args = [
        stack["wqkv"], stack["bqkv"],      # [L,H,3H], [L,1,3H]
        stack["wo"], stack["bo"],          # [L,H,H],  [L,1,H]
        stack["ln1_g"], stack["ln1_b"],    # [L,1,H]
        stack["w1"], stack["b1"],          # [L,H,I],  [L,1,I]
        stack["w2"], stack["b2"],          # [L,I,H],  [L,1,H]
        stack["ln2_g"], stack["ln2_b"],    # [L,1,H]
    ]
    weight_specs = [full(w.shape) for w in weight_args]

    return pl.pallas_call(
        _make_encoder_kernel(L),
        out_shape=jax.ShapeDtypeStruct((Bq, Sq, Hd), jnp.float32),
        grid=(Bq,),
        in_specs=[pl.BlockSpec((1, Sq, Hd), lambda b: (b, 0, 0)),
                  pl.BlockSpec((1, 1, Sq), lambda b: (b, 0, 0)),
                  full((1, Hd)), full((1, Hd))] + weight_specs,
        out_specs=pl.BlockSpec((1, Sq, Hd), lambda b: (b, 0, 0)),
        compiler_params=pltpu.CompilerParams(
            dimension_semantics=("parallel",)),     # lets v7x split batch over 2 TCs
    )(emb, key_mask,
      emb_ln_g.reshape(1, Hd), emb_ln_b.reshape(1, Hd),
      *weight_args)


# ----------------------------- fused pooler/classifier head -----------------------------
def _make_head_kernel(with_loss: bool):
    """Fused pooler (tanh) + classifier + sigmoid (+ BCE mean loss)."""
    def kernel(cls_ref, pw_ref, pb_ref, cw_ref, cb_ref, *rest):
        if with_loss:
            y_ref, pooled_ref, probs_ref, loss_ref = rest
        else:
            pooled_ref, probs_ref = rest
        pooled = jnp.tanh(jnp.dot(cls_ref[...], pw_ref[...],
                                  preferred_element_type=jnp.float32) + pb_ref[...])
        pooled_ref[...] = pooled
        logits = jnp.dot(pooled, cw_ref[...],
                         preferred_element_type=jnp.float32) + cb_ref[...]
        p = 1.0 / (1.0 + jnp.exp(-logits))
        probs_ref[...] = p
        if with_loss:
            y = y_ref[...]
            # torch.nn.BCELoss clamps log() at -100
            log_p = jnp.maximum(jnp.log(p), -100.0)
            log_1mp = jnp.maximum(jnp.log(1.0 - p), -100.0)
            nll = -(y * log_p + (1.0 - y) * log_1mp)
            loss_ref[...] = jnp.mean(nll, keepdims=True)
    return kernel


def pooler_classifier_head(cls_token, pool_w, pool_b, cls_w, cls_b, labels=None):
    Bq, Hd = cls_token.shape
    C = cls_w.shape[1]
    if labels is None:
        pooled, probs = pl.pallas_call(
            _make_head_kernel(False),
            out_shape=(jax.ShapeDtypeStruct((Bq, Hd), jnp.float32),
                       jax.ShapeDtypeStruct((Bq, C), jnp.float32)),
        )(cls_token, pool_w, pool_b.reshape(1, Hd), cls_w, cls_b.reshape(1, C))
        return jnp.float32(0.0), probs, pooled
    pooled, probs, loss = pl.pallas_call(
        _make_head_kernel(True),
        out_shape=(jax.ShapeDtypeStruct((Bq, Hd), jnp.float32),
                   jax.ShapeDtypeStruct((Bq, C), jnp.float32),
                   jax.ShapeDtypeStruct((1, 1), jnp.float32)),
    )(cls_token, pool_w, pool_b.reshape(1, Hd), cls_w, cls_b.reshape(1, C), labels)
    return loss[0, 0], probs, pooled


# ----------------------------- parameter init (deterministic) -----------------------------
def init_params(key):
    def normal(k, shape, std=0.02):
        return std * jax.random.normal(k, shape, dtype=jnp.float32)

    keys = iter(jax.random.split(key, 128))
    p = {
        "word_emb": normal(next(keys), (VOCAB, H)),
        "pos_emb": normal(next(keys), (MAX_POS, H)),
        "type_emb": normal(next(keys), (TYPE_VOCAB, H)),
        "emb_ln_g": jnp.ones((H,), jnp.float32),
        "emb_ln_b": jnp.zeros((H,), jnp.float32),
        "pool_w": normal(next(keys), (H, H)),
        "pool_b": jnp.zeros((H,), jnp.float32),
        "cls_w": normal(next(keys), (H, NUM_CLASSES)),
        "cls_b": jnp.zeros((NUM_CLASSES,), jnp.float32),
    }

    stacks = {k: [] for k in ["wqkv", "bqkv", "wo", "bo", "ln1_g", "ln1_b",
                              "w1", "b1", "w2", "b2", "ln2_g", "ln2_b"]}
    for _ in range(L):
        wq = normal(next(keys), (H, H))
        wk = normal(next(keys), (H, H))
        wv = normal(next(keys), (H, H))
        stacks["wqkv"].append(jnp.concatenate([wq, wk, wv], axis=1))    # fused [H, 3H]
        stacks["bqkv"].append(jnp.zeros((1, 3 * H), jnp.float32))
        stacks["wo"].append(normal(next(keys), (H, H)))
        stacks["bo"].append(jnp.zeros((1, H), jnp.float32))
        stacks["ln1_g"].append(jnp.ones((1, H), jnp.float32))
        stacks["ln1_b"].append(jnp.zeros((1, H), jnp.float32))
        stacks["w1"].append(normal(next(keys), (H, I)))
        stacks["b1"].append(jnp.zeros((1, I), jnp.float32))
        stacks["w2"].append(normal(next(keys), (I, H)))
        stacks["b2"].append(jnp.zeros((1, H), jnp.float32))
        stacks["ln2_g"].append(jnp.ones((1, H), jnp.float32))
        stacks["ln2_b"].append(jnp.zeros((1, H), jnp.float32))
    p["layer_stack"] = {k: jnp.stack(v, axis=0) for k, v in stacks.items()}
    return p


# ----------------------------- model forward (glue around kernels) -----------------------------
def bert_classifier_forward(params, input_ids, attention_mask=None,
                            token_type_ids=None, position_ids=None,
                            head_mask=None, labels=None):
    Bq, Sq = input_ids.shape
    if attention_mask is None:
        attention_mask = jnp.ones((Bq, Sq), jnp.float32)
    if token_type_ids is None:
        token_type_ids = jnp.zeros((Bq, Sq), jnp.int32)
    if position_ids is None:
        position_ids = jnp.broadcast_to(jnp.arange(Sq, dtype=jnp.int32), (Bq, Sq))
    # TODO(synk): head_mask is not supported (only the default None behaviour).

    # ---- embedding gathers in JAX glue; everything downstream is Pallas ----
    emb = (params["word_emb"][input_ids]
           + params["pos_emb"][position_ids]
           + params["type_emb"][token_type_ids])

    # raw key mask [B, 1, S]; the -10000 additive bias is built inside the kernel
    key_mask = attention_mask.astype(jnp.float32).reshape(Bq, 1, Sq)

    # ---- single fused encoder pallas_call: emb LN + all L layers ----
    sequence_output = bert_encoder(emb, key_mask,
                                   params["emb_ln_g"], params["emb_ln_b"],
                                   params["layer_stack"])          # outputs[0]
    cls_token = sequence_output[:, 0, :]                           # [CLS]

    # ---- fused pooler + classifier + sigmoid + BCE ----
    loss, cls_output, pooled_output = pooler_classifier_head(
        cls_token, params["pool_w"], params["pool_b"],
        params["cls_w"], params["cls_b"], labels)

    # matches: (loss, sigmoid(classifier(pooled)), outputs[-1]=pooled, outputs[0]=sequence)
    return loss, cls_output, pooled_output, sequence_output


# ----------------------------- main -----------------------------
if __name__ == "__main__":
    key = jax.random.PRNGKey(0)
    k_params, k_ids, k_mask, k_labels = jax.random.split(key, 4)

    params = init_params(k_params)

    input_ids = jax.random.randint(k_ids, (B, S), 0, VOCAB, dtype=jnp.int32)
    attention_mask = jnp.ones((B, S), jnp.float32).at[1, 6:].set(0.0)  # pad tail of 2nd example
    token_type_ids = jnp.zeros((B, S), jnp.int32)
    labels = jax.random.bernoulli(k_labels, 0.5, (B, NUM_CLASSES)).astype(jnp.float32)

    fwd = jax.jit(bert_classifier_forward)
    loss, cls_output, pooled, seq_out = fwd(
        params, input_ids,
        attention_mask=attention_mask,
        token_type_ids=token_type_ids,
        labels=labels,
    )

    jax.block_until_ready((loss, cls_output, pooled, seq_out))
    assert cls_output.shape == (B, NUM_CLASSES)
    assert pooled.shape == (B, H)
    assert seq_out.shape == (B, S, H)
    assert bool(jnp.isfinite(loss))
    print("KERNEL_OK")
</pallas_src>

<mosaic_0001>
module attributes {stable_mosaic.version = 11 : i64} {
  func.func @kernel(%arg0: memref<2x32xf32, #tpu.memory_space<vmem>>, %arg1: memref<32x32xf32, #tpu.memory_space<vmem>>, %arg2: memref<1x32xf32, #tpu.memory_space<vmem>>, %arg3: memref<32x3xf32, #tpu.memory_space<vmem>>, %arg4: memref<1x3xf32, #tpu.memory_space<vmem>>, %arg5: memref<2x3xf32, #tpu.memory_space<vmem>>, %arg6: memref<2x32xf32, #tpu.memory_space<vmem>>, %arg7: memref<2x3xf32, #tpu.memory_space<vmem>>, %arg8: memref<1x1xf32, #tpu.memory_space<vmem>>) attributes {dimension_semantics = [], scalar_prefetch = 0 : i64, scratch_operands = 0 : i64, tpu.core_type = #tpu.core_type<tc>} {
    %c0 = arith.constant 0 : index
    %c0_0 = arith.constant 0 : index
    %0 = vector.load %arg0[%c0, %c0_0] : memref<2x32xf32, #tpu.memory_space<vmem>>, vector<2x32xf32>
    %c0_1 = arith.constant 0 : index
    %c0_2 = arith.constant 0 : index
    %1 = vector.load %arg1[%c0_1, %c0_2] : memref<32x32xf32, #tpu.memory_space<vmem>>, vector<32x32xf32>
    %cst = arith.constant dense<0.000000e+00> : vector<2x32xf32>
    %2 = tpu.matmul %0, %1, %cst {dimension_numbers = #tpu.dot_dimension_numbers<[1], [0], [0], [1], [0, 0, 1, 1], [], []>} : vector<2x32xf32>, vector<32x32xf32>, vector<2x32xf32> -> vector<2x32xf32>
    %c0_3 = arith.constant 0 : index
    %c0_4 = arith.constant 0 : index
    %3 = vector.load %arg2[%c0_3, %c0_4] : memref<1x32xf32, #tpu.memory_space<vmem>>, vector<1x32xf32>
    %4 = vector.broadcast %3 : vector<1x32xf32> to vector<2x32xf32>
    %5 = arith.addf %2, %4 : vector<2x32xf32>
    %6 = math.tanh %5 : vector<2x32xf32>
    %c0_5 = arith.constant 0 : index
    %c0_6 = arith.constant 0 : index
    %7 = vector.load %arg6[%c0_5, %c0_6] : memref<2x32xf32, #tpu.memory_space<vmem>>, vector<2x32xf32>
    tpu.vector_store %arg6[%c0_5, %c0_6], %6 {strides = array<i32>} : memref<2x32xf32, #tpu.memory_space<vmem>>, vector<2x32xf32>,
    %c0_7 = arith.constant 0 : index
    %c0_8 = arith.constant 0 : index
    %8 = vector.load %arg3[%c0_7, %c0_8] : memref<32x3xf32, #tpu.memory_space<vmem>>, vector<32x3xf32>
    %cst_9 = arith.constant dense<0.000000e+00> : vector<2x3xf32>
    %9 = tpu.matmul %6, %8, %cst_9 {dimension_numbers = #tpu.dot_dimension_numbers<[1], [0], [0], [1], [0, 0, 1, 1], [], []>} : vector<2x32xf32>, vector<32x3xf32>, vector<2x3xf32> -> vector<2x3xf32>
    %c0_10 = arith.constant 0 : index
    %c0_11 = arith.constant 0 : index
    %10 = vector.load %arg4[%c0_10, %c0_11] : memref<1x3xf32, #tpu.memory_space<vmem>>, vector<1x3xf32>
    %11 = vector.broadcast %10 : vector<1x3xf32> to vector<2x3xf32>
    %12 = arith.addf %9, %11 : vector<2x3xf32>
    %cst_12 = arith.constant 0.000000e+00 : f32
    %13 = vector.broadcast %cst_12 : f32 to vector<2x3xf32>
    %14 = arith.subf %13, %12 : vector<2x3xf32>
    %15 = math.exp %14 : vector<2x3xf32>
    %cst_13 = arith.constant 1.000000e+00 : f32
    %16 = vector.broadcast %cst_13 : f32 to vector<2x3xf32>
    %17 = arith.addf %16, %15 : vector<2x3xf32>
    %cst_14 = arith.constant 1.000000e+00 : f32
    %18 = vector.broadcast %cst_14 : f32 to vector<2x3xf32>
    %19 = arith.divf %18, %17 : vector<2x3xf32>
    %c0_15 = arith.constant 0 : index
    %c0_16 = arith.constant 0 : index
    %20 = vector.load %arg7[%c0_15, %c0_16] : memref<2x3xf32, #tpu.memory_space<vmem>>, vector<2x3xf32>
    tpu.vector_store %arg7[%c0_15, %c0_16], %19 {strides = array<i32>} : memref<2x3xf32, #tpu.memory_space<vmem>>, vector<2x3xf32>,
    %c0_17 = arith.constant 0 : index
    %c0_18 = arith.constant 0 : index
    %21 = vector.load %arg5[%c0_17, %c0_18] : memref<2x3xf32, #tpu.memory_space<vmem>>, vector<2x3xf32>
    %22 = math.log %19 : vector<2x3xf32>
    %cst_19 = arith.constant -1.000000e+02 : f32
    %23 = vector.broadcast %cst_19 : f32 to vector<2x3xf32>
    %24 = arith.maximumf %22, %23 : vector<2x3xf32>
    %cst_20 = arith.constant 1.000000e+00 : f32
    %25 = vector.broadcast %cst_20 : f32 to vector<2x3xf32>
    %26 = arith.subf %25, %19 : vector<2x3xf32>
    %27 = math.log %26 : vector<2x3xf32>
    %cst_21 = arith.constant -1.000000e+02 : f32
    %28 = vector.broadcast %cst_21 : f32 to vector<2x3xf32>
    %29 = arith.maximumf %27, %28 : vector<2x3xf32>
    %30 = arith.mulf %21, %24 : vector<2x3xf32>
    %cst_22 = arith.constant 1.000000e+00 : f32
    %31 = vector.broadcast %cst_22 : f32 to vector<2x3xf32>
    %32 = arith.subf %31, %21 : vector<2x3xf32>
    %33 = arith.mulf %32, %29 : vector<2x3xf32>
    %34 = arith.addf %30, %33 : vector<2x3xf32>
    %cst_23 = arith.constant 0.000000e+00 : f32
    %35 = vector.broadcast %cst_23 : f32 to vector<2x3xf32>
    %36 = arith.subf %35, %34 : vector<2x3xf32>
    %37 = vector.shape_cast %36 : vector<2x3xf32> to vector<1x2x3xf32>
    %cst_24 = arith.constant dense<0.000000e+00> : vector<1xf32>
    %38 = vector.multi_reduction <add>, %37, %cst_24 [1, 2] : vector<1x2x3xf32> to vector<1xf32>
    %39 = vector.shape_cast %38 : vector<1xf32> to vector<1x1x1xf32>
    %40 = vector.extract %39[0, 0, 0] : f32 from vector<1x1x1xf32>
    %41 = vector.broadcast %40 : f32 to vector<1x1xf32>
    %cst_25 = arith.constant 6.000000e+00 : f32
    %42 = vector.broadcast %cst_25 : f32 to vector<1x1xf32>
    %43 = arith.divf %41, %42 : vector<1x1xf32>
    %c0_26 = arith.constant 0 : index
    %c0_27 = arith.constant 0 : index
    %44 = vector.load %arg8[%c0_26, %c0_27] : memref<1x1xf32, #tpu.memory_space<vmem>>, vector<1x1xf32>
    tpu.vector_store %arg8[%c0_26, %c0_27], %43 {strides = array<i32>} : memref<1x1xf32, #tpu.memory_space<vmem>>, vector<1x1xf32>,
    return
  }
}

module attributes {stable_mosaic.version = 11 : i64} {
  func.func @kernel(%arg0: i32, %arg1: memref<1x8x32xf32, #tpu.memory_space<vmem>>, %arg2: memref<1x1x8xf32, #tpu.memory_space<vmem>>, %arg3: memref<1x32xf32, #tpu.memory_space<vmem>>, %arg4: memref<1x32xf32, #tpu.memory_space<vmem>>, %arg5: memref<2x32x96xf32, #tpu.memory_space<vmem>>, %arg6: memref<2x1x96xf32, #tpu.memory_space<vmem>>, %arg7: memref<2x32x32xf32, #tpu.memory_space<vmem>>, %arg8: memref<2x1x32xf32, #tpu.memory_space<vmem>>, %arg9: memref<2x1x32xf32, #tpu.memory_space<vmem>>, %arg10: memref<2x1x32xf32, #tpu.memory_space<vmem>>, %arg11: memref<2x32x64xf32, #tpu.memory_space<vmem>>, %arg12: memref<2x1x64xf32, #tpu.memory_space<vmem>>, %arg13: memref<2x64x32xf32, #tpu.memory_space<vmem>>, %arg14: memref<2x1x32xf32, #tpu.memory_space<vmem>>, %arg15: memref<2x1x32xf32, #tpu.memory_space<vmem>>, %arg16: memref<2x1x32xf32, #tpu.memory_space<vmem>>, %arg17: memref<1x8x32xf32, #tpu.memory_space<vmem>>) attributes {dimension_semantics = [#tpu.dimension_semantics<parallel>], iteration_bounds = array<i64: 2>, scalar_prefetch = 0 : i64, scratch_operands = 0 : i64, tpu.core_type = #tpu.core_type<tc>, window_params = [{transform_indices = @transform_0, window_bounds = array<i64: 1, 8, 32>}, {transform_indices = @transform_1, window_bounds = array<i64: 1, 1, 8>}, {pipeline_mode = #tpu.pipeline_mode<synchronous>, transform_indices = @transform_2, window_bounds = array<i64: 1, 32>}, {pipeline_mode = #tpu.pipeline_mode<synchronous>, transform_indices = @transform_3, window_bounds = array<i64: 1, 32>}, {pipeline_mode = #tpu.pipeline_mode<synchronous>, transform_indices = @transform_4, window_bounds = array<i64: 2, 32, 96>}, {pipeline_mode = #tpu.pipeline_mode<synchronous>, transform_indices = @transform_5, window_bounds = array<i64: 2, 1, 96>}, {pipeline_mode = #tpu.pipeline_mode<synchronous>, transform_indices = @transform_6, window_bounds = array<i64: 2, 32, 32>}, {pipeline_mode = #tpu.pipeline_mode<synchronous>, transform_indices = @transform_7, window_bounds = array<i64: 2, 1, 32>}, {pipeline_mode = #tpu.pipeline_mode<synchronous>, transform_indices = @transform_8, window_bounds = array<i64: 2, 1, 32>}, {pipeline_mode = #tpu.pipeline_mode<synchronous>, transform_indices = @transform_9, window_bounds = array<i64: 2, 1, 32>}, {pipeline_mode = #tpu.pipeline_mode<synchronous>, transform_indices = @transform_10, window_bounds = array<i64: 2, 32, 64>}, {pipeline_mode = #tpu.pipeline_mode<synchronous>, transform_indices = @transform_11, window_bounds = array<i64: 2, 1, 64>}, {pipeline_mode = #tpu.pipeline_mode<synchronous>, transform_indices = @transform_12, window_bounds = array<i64: 2, 64, 32>}, {pipeline_mode = #tpu.pipeline_mode<synchronous>, transform_indices = @transform_13, window_bounds = array<i64: 2, 1, 32>}, {pipeline_mode = #tpu.pipeline_mode<synchronous>, transform_indices = @transform_14, window_bounds = array<i64: 2, 1, 32>}, {pipeline_mode = #tpu.pipeline_mode<synchronous>, transform_indices = @transform_15, window_bounds = array<i64: 2, 1, 32>}, {transform_indices = @transform_16, window_bounds = array<i64: 1, 8, 32>}]} {
    %c0 = arith.constant 0 : index
    %c0_0 = arith.constant 0 : index
    %c0_1 = arith.constant 0 : index
    %0 = vector.load %arg1[%c0, %c0_0, %c0_1] : memref<1x8x32xf32, #tpu.memory_space<vmem>>, vector<1x8x32xf32>
    %1 = vector.shape_cast %0 : vector<1x8x32xf32> to vector<8x32xf32>
    %c0_2 = arith.constant 0 : index
    %c0_3 = arith.constant 0 : index
    %2 = vector.load %arg3[%c0_2, %c0_3] : memref<1x32xf32, #tpu.memory_space<vmem>>, vector<1x32xf32>
    %c0_4 = arith.constant 0 : index
    %c0_5 = arith.constant 0 : index
    %3 = vector.load %arg4[%c0_4, %c0_5] : memref<1x32xf32, #tpu.memory_space<vmem>>, vector<1x32xf32>
    %cst = arith.constant dense<0.000000e+00> : vector<8xf32>
    %4 = vector.multi_reduction <add>, %1, %cst [1] : vector<8x32xf32> to vector<8xf32>
    %5 = vector.shape_cast %4 : vector<8xf32> to vector<8x1xf32>
    %cst_6 = arith.constant 3.200000e+01 : f32
    %6 = vector.broadcast %cst_6 : f32 to vector<8x1xf32>
    %7 = arith.divf %5, %6 : vector<8x1xf32>
    %8 = vector.broadcast %7 : vector<8x1xf32> to vector<8x32xf32>
    %9 = arith.subf %1, %8 : vector<8x32xf32>
    %10 = arith.mulf %9, %9 : vector<8x32xf32>
    %cst_7 = arith.constant dense<0.000000e+00> : vector<8xf32>
    %11 = vector.multi_reduction <add>, %10, %cst_7 [1] : vector<8x32xf32> to vector<8xf32>
    %12 = vector.shape_cast %11 : vector<8xf32> to vector<8x1xf32>
    %cst_8 = arith.constant 3.200000e+01 : f32
    %13 = vector.broadcast %cst_8 : f32 to vector<8x1xf32>
    %14 = arith.divf %12, %13 : vector<8x1xf32>
    %15 = vector.broadcast %7 : vector<8x1xf32> to vector<8x32xf32>
    %16 = arith.subf %1, %15 : vector<8x32xf32>
    %cst_9 = arith.constant 9.99999996E-13 : f32
    %17 = vector.broadcast %cst_9 : f32 to vector<8x1xf32>
    %18 = arith.addf %14, %17 : vector<8x1xf32>
    %19 = math.rsqrt %18 : vector<8x1xf32>
    %20 = vector.broadcast %19 : vector<8x1xf32> to vector<8x32xf32>
    %21 = arith.mulf %16, %20 : vector<8x32xf32>
    %22 = vector.broadcast %2 : vector<1x32xf32> to vector<8x32xf32>
    %23 = arith.mulf %21, %22 : vector<8x32xf32>
    %24 = vector.broadcast %3 : vector<1x32xf32> to vector<8x32xf32>
    %25 = arith.addf %23, %24 : vector<8x32xf32>
    %c0_10 = arith.constant 0 : index
    %c0_11 = arith.constant 0 : index
    %c0_12 = arith.constant 0 : index
    %26 = vector.load %arg2[%c0_10, %c0_11, %c0_12] : memref<1x1x8xf32, #tpu.memory_space<vmem>>, vector<1x1x8xf32>
    %27 = vector.shape_cast %26 : vector<1x1x8xf32> to vector<1x8xf32>
    %cst_13 = arith.constant 1.000000e+00 : f32
    %28 = vector.broadcast %cst_13 : f32 to vector<1x8xf32>
    %29 = arith.subf %28, %27 : vector<1x8xf32>
    %cst_14 = arith.constant -1.000000e+04 : f32
    %30 = vector.broadcast %cst_14 : f32 to vector<1x8xf32>
    %31 = arith.mulf %29, %30 : vector<1x8xf32>
    %c0_15 = arith.constant 0 : index
    %c0_16 = arith.constant 0 : index
    %c0_17 = arith.constant 0 : index
    %32 = vector.load %arg5[%c0_15, %c0_16, %c0_17] : memref<2x32x96xf32, #tpu.memory_space<vmem>>, vector<1x32x96xf32>
    %33 = vector.shape_cast %32 : vector<1x32x96xf32> to vector<32x96xf32>
    %34 = arith.truncf %25 : vector<8x32xf32> to vector<8x32xbf16>
    %35 = arith.truncf %33 : vector<32x96xf32> to vector<32x96xbf16>
    %cst_18 = arith.constant dense<0.000000e+00> : vector<8x96xf32>
    %36 = tpu.matmul %34, %35, %cst_18 {dimension_numbers = #tpu.dot_dimension_numbers<[1], [0], [0], [1], [0, 0, 1, 1], [], []>} : vector<8x32xbf16>, vector<32x96xbf16>, vector<8x96xf32> -> vector<8x96xf32>
    %c0_19 = arith.constant 0 : index
    %c0_20 = arith.constant 0 : index
    %c0_21 = arith.constant 0 : index
    %37 = vector.load %arg6[%c0_19, %c0_20, %c0_21] : memref<2x1x96xf32, #tpu.memory_space<vmem>>, vector<1x1x96xf32>
    %38 = vector.shape_cast %37 : vector<1x1x96xf32> to vector<1x96xf32>
    %39 = vector.broadcast %38 : vector<1x96xf32> to vector<8x96xf32>
    %40 = arith.addf %36, %39 : vector<8x96xf32>
    %41 = vector.extract_strided_slice %40 {offsets = [0, 0], sizes = [8, 16], strides = [1, 1]} : vector<8x96xf32> to vector<8x16xf32>
    %42 = vector.extract_strided_slice %40 {offsets = [0, 32], sizes = [8, 16], strides = [1, 1]} : vector<8x96xf32> to vector<8x16xf32>
    %43 = vector.extract_strided_slice %40 {offsets = [0, 64], sizes = [8, 16], strides = [1, 1]} : vector<8x96xf32> to vector<8x16xf32>
    %44 = tpu.transpose %42, [1, 0] : vector<8x16xf32> -> vector<16x8xf32>
    %45 = arith.truncf %41 : vector<8x16xf32> to vector<8x16xbf16>
    %46 = arith.truncf %44 : vector<16x8xf32> to vector<16x8xbf16>
    %cst_22 = arith.constant dense<0.000000e+00> : vector<8x8xf32>
    %47 = tpu.matmul %45, %46, %cst_22 {dimension_numbers = #tpu.dot_dimension_numbers<[1], [0], [0], [1], [0, 0, 1, 1], [], []>} : vector<8x16xbf16>, vector<16x8xbf16>, vector<8x8xf32> -> vector<8x8xf32>
    %cst_23 = arith.constant 2.500000e-01 : f32
    %48 = vector.broadcast %cst_23 : f32 to vector<8x8xf32>
    %49 = arith.mulf %47, %48 : vector<8x8xf32>
    %50 = vector.broadcast %31 : vector<1x8xf32> to vector<8x8xf32>
    %51 = arith.addf %49, %50 : vector<8x8xf32>
    %cst_24 = arith.constant dense<0xFF800000> : vector<8xf32>
    %52 = vector.multi_reduction <maximumf>, %51, %cst_24 [1] : vector<8x8xf32> to vector<8xf32>
    %53 = vector.shape_cast %52 : vector<8xf32> to vector<8x1xf32>
    %54 = vector.broadcast %53 : vector<8x1xf32> to vector<8x8xf32>
    %55 = arith.subf %51, %54 : vector<8x8xf32>
    %56 = math.exp %55 : vector<8x8xf32>
    %cst_25 = arith.constant dense<0.000000e+00> : vector<8xf32>
    %57 = vector.multi_reduction <add>, %56, %cst_25 [1] : vector<8x8xf32> to vector<8xf32>
    %58 = vector.shape_cast %57 : vector<8xf32> to vector<8x1xf32>
    %59 = tpu.reciprocal %58 {approx = true} : vector<8x1xf32> -> vector<8x1xf32>
    %60 = vector.broadcast %59 : vector<8x1xf32> to vector<8x8xf32>
    %61 = arith.mulf %56, %60 : vector<8x8xf32>
    %62 = arith.truncf %61 : vector<8x8xf32> to vector<8x8xbf16>
    %63 = arith.truncf %43 : vector<8x16xf32> to vector<8x16xbf16>
    %cst_26 = arith.constant dense<0.000000e+00> : vector<8x16xf32>
    %64 = tpu.matmul %62, %63, %cst_26 {dimension_numbers = #tpu.dot_dimension_numbers<[1], [0], [0], [1], [0, 0, 1, 1], [], []>} : vector<8x8xbf16>, vector<8x16xbf16>, vector<8x16xf32> -> vector<8x16xf32>
    %65 = vector.extract_strided_slice %40 {offsets = [0, 16], sizes = [8, 16], strides = [1, 1]} : vector<8x96xf32> to vector<8x16xf32>
    %66 = vector.extract_strided_slice %40 {offsets = [0, 48], sizes = [8, 16], strides = [1, 1]} : vector<8x96xf32> to vector<8x16xf32>
    %67 = vector.extract_strided_slice %40 {offsets = [0, 80], sizes = [8, 16], strides = [1, 1]} : vector<8x96xf32> to vector<8x16xf32>
    %68 = tpu.transpose %66, [1, 0] : vector<8x16xf32> -> vector<16x8xf32>
    %69 = arith.truncf %65 : vector<8x16xf32> to vector<8x16xbf16>
    %70 = arith.truncf %68 : vector<16x8xf32> to vector<16x8xbf16>
    %cst_27 = arith.constant dense<0.000000e+00> : vector<8x8xf32>
    %71 = tpu.matmul %69, %70, %cst_27 {dimension_numbers = #tpu.dot_dimension_numbers<[1], [0], [0], [1], [0, 0, 1, 1], [], []>} : vector<8x16xbf16>, vector<16x8xbf16>, vector<8x8xf32> -> vector<8x8xf32>
    %cst_28 = arith.constant 2.500000e-01 : f32
    %72 = vector.broadcast %cst_28 : f32 to vector<8x8xf32>
    %73 = arith.mulf %71, %72 : vector<8x8xf32>
    %74 = vector.broadcast %31 : vector<1x8xf32> to vector<8x8xf32>
    %75 = arith.addf %73, %74 : vector<8x8xf32>
    %cst_29 = arith.constant dense<0xFF800000> : vector<8xf32>
    %76 = vector.multi_reduction <maximumf>, %75, %cst_29 [1] : vector<8x8xf32> to vector<8xf32>
    %77 = vector.shape_cast %76 : vector<8xf32> to vector<8x1xf32>
    %78 = vector.broadcast %77 : vector<8x1xf32> to vector<8x8xf32>
    %79 = arith.subf %75, %78 : vector<8x8xf32>
    %80 = math.exp %79 : vector<8x8xf32>
    %cst_30 = arith.constant dense<0.000000e+00> : vector<8xf32>
    %81 = vector.multi_reduction <add>, %80, %cst_30 [1] : vector<8x8xf32> to vector<8xf32>
    %82 = vector.shape_cast %81 : vector<8xf32> to vector<8x1xf32>
    %83 = tpu.reciprocal %82 {approx = true} : vector<8x1xf32> -> vector<8x1xf32>
    %84 = vector.broadcast %83 : vector<8x1xf32> to vector<8x8xf32>
    %85 = arith.mulf %80, %84 : vector<8x8xf32>
    %86 = arith.truncf %85 : vector<8x8xf32> to vector<8x8xbf16>
    %87 = arith.truncf %67 : vector<8x16xf32> to vector<8x16xbf16>
    %cst_31 = arith.constant dense<0.000000e+00> : vector<8x16xf32>
    %88 = tpu.matmul %86, %87, %cst_31 {dimension_numbers = #tpu.dot_dimension_numbers<[1], [0], [0], [1], [0, 0, 1, 1], [], []>} : vector<8x8xbf16>, vector<8x16xbf16>, vector<8x16xf32> -> vector<8x16xf32>
    %89 = tpu.concatenate %64, %88 in 1 : vector<8x16xf32>, vector<8x16xf32> -> vector<8x32xf32>
    %c0_32 = arith.constant 0 : index
    %c0_33 = arith.constant 0 : index
    %c0_34 = arith.constant 0 : index
    %90 = vector.load %arg7[%c0_32, %c0_33, %c0_34] : memref<2x32x32xf32, #tpu.memory_space<vmem>>, vector<1x32x32xf32>
    %91 = vector.shape_cast %90 : vector<1x32x32xf32> to vector<32x32xf32>
    %92 = arith.truncf %89 : vector<8x32xf32> to vector<8x32xbf16>
    %93 = arith.truncf %91 : vector<32x32xf32> to vector<32x32xbf16>
    %cst_35 = arith.constant dense<0.000000e+00> : vector<8x32xf32>
    %94 = tpu.matmul %92, %93, %cst_35 {dimension_numbers = #tpu.dot_dimension_numbers<[1], [0], [0], [1], [0, 0, 1, 1], [], []>} : vector<8x32xbf16>, vector<32x32xbf16>, vector<8x32xf32> -> vector<8x32xf32>
    %c0_36 = arith.constant 0 : index
    %c0_37 = arith.constant 0 : index
    %c0_38 = arith.constant 0 : index
    %95 = vector.load %arg8[%c0_36, %c0_37, %c0_38] : memref<2x1x32xf32, #tpu.memory_space<vmem>>, vector<1x1x32xf32>
    %96 = vector.shape_cast %95 : vector<1x1x32xf32> to vector<1x32xf32>
    %97 = vector.broadcast %96 : vector<1x32xf32> to vector<8x32xf32>
    %98 = arith.addf %94, %97 : vector<8x32xf32>
    %99 = arith.addf %25, %98 : vector<8x32xf32>
    %c0_39 = arith.constant 0 : index
    %c0_40 = arith.constant 0 : index
    %c0_41 = arith.constant 0 : index
    %100 = vector.load %arg9[%c0_39, %c0_40, %c0_41] : memref<2x1x32xf32, #tpu.memory_space<vmem>>, vector<1x1x32xf32>
    %101 = vector.shape_cast %100 : vector<1x1x32xf32> to vector<1x32xf32>
    %c0_42 = arith.constant 0 : index
    %c0_43 = arith.constant 0 : index
    %c0_44 = arith.constant 0 : index
    %102 = vector.load %arg10[%c0_42, %c0_43, %c0_44] : memref<2x1x32xf32, #tpu.memory_space<vmem>>, vector<1x1x32xf32>
    %103 = vector.shape_cast %102 : vector<1x1x32xf32> to vector<1x32xf32>
    %cst_45 = arith.constant dense<0.000000e+00> : vector<8xf32>
    %104 = vector.multi_reduction <add>, %99, %cst_45 [1] : vector<8x32xf32> to vector<8xf32>
    %105 = vector.shape_cast %104 : vector<8xf32> to vector<8x1xf32>
    %cst_46 = arith.constant 3.200000e+01 : f32
    %106 = vector.broadcast %cst_46 : f32 to vector<8x1xf32>
    %107 = arith.divf %105, %106 : vector<8x1xf32>
    %108 = vector.broadcast %107 : vector<8x1xf32> to vector<8x32xf32>
    %109 = arith.subf %99, %108 : vector<8x32xf32>
    %110 = arith.mulf %109, %109 : vector<8x32xf32>
    %cst_47 = arith.constant dense<0.000000e+00> : vector<8xf32>
    %111 = vector.multi_reduction <add>, %110, %cst_47 [1] : vector<8x32xf32> to vector<8xf32>
    %112 = vector.shape_cast %111 : vector<8xf32> to vector<8x1xf32>
    %cst_48 = arith.constant 3.200000e+01 : f32
    %113 = vector.broadcast %cst_48 : f32 to vector<8x1xf32>
    %114 = arith.divf %112, %113 : vector<8x1xf32>
    %115 = vector.broadcast %107 : vector<8x1xf32> to vector<8x32xf32>
    %116 = arith.subf %99, %115 : vector<8x32xf32>
    %cst_49 = arith.constant 9.99999996E-13 : f32
    %117 = vector.broadcast %cst_49 : f32 to vector<8x1xf32>
    %118 = arith.addf %114, %117 : vector<8x1xf32>
    %119 = math.rsqrt %118 : vector<8x1xf32>
    %120 = vector.broadcast %119 : vector<8x1xf32> to vector<8x32xf32>
    %121 = arith.mulf %116, %120 : vector<8x32xf32>
    %122 = vector.broadcast %101 : vector<1x32xf32> to vector<8x32xf32>
    %123 = arith.mulf %121, %122 : vector<8x32xf32>
    %124 = vector.broadcast %103 : vector<1x32xf32> to vector<8x32xf32>
    %125 = arith.addf %123, %124 : vector<8x32xf32>
    %c0_50 = arith.constant 0 : index
    %c0_51 = arith.constant 0 : index
    %c0_52 = arith.constant 0 : index
    %126 = vector.load %arg11[%c0_50, %c0_51, %c0_52] : memref<2x32x64xf32, #tpu.memory_space<vmem>>, vector<1x32x64xf32>
    %127 = vector.shape_cast %126 : vector<1x32x64xf32> to vector<32x64xf32>
    %128 = arith.truncf %125 : vector<8x32xf32> to vector<8x32xbf16>
    %129 = arith.truncf %127 : vector<32x64xf32> to vector<32x64xbf16>
    %cst_53 = arith.constant dense<0.000000e+00> : vector<8x64xf32>
    %130 = tpu.matmul %128, %129, %cst_53 {dimension_numbers = #tpu.dot_dimension_numbers<[1], [0], [0], [1], [0, 0, 1, 1], [], []>} : vector<8x32xbf16>, vector<32x64xbf16>, vector<8x64xf32> -> vector<8x64xf32>
    %c0_54 = arith.constant 0 : index
    %c0_55 = arith.constant 0 : index
    %c0_56 = arith.constant 0 : index
    %131 = vector.load %arg12[%c0_54, %c0_55, %c0_56] : memref<2x1x64xf32, #tpu.memory_space<vmem>>, vector<1x1x64xf32>
    %132 = vector.shape_cast %131 : vector<1x1x64xf32> to vector<1x64xf32>
    %133 = vector.broadcast %132 : vector<1x64xf32> to vector<8x64xf32>
    %134 = arith.addf %130, %133 : vector<8x64xf32>
    %cst_57 = arith.constant 5.000000e-01 : f32
    %135 = vector.broadcast %cst_57 : f32 to vector<8x64xf32>
    %136 = arith.mulf %135, %134 : vector<8x64xf32>
    %cst_58 = arith.constant 4.471500e-02 : f32
    %137 = vector.broadcast %cst_58 : f32 to vector<8x64xf32>
    %138 = arith.mulf %137, %134 : vector<8x64xf32>
    %139 = arith.mulf %138, %134 : vector<8x64xf32>
    %140 = arith.mulf %139, %134 : vector<8x64xf32>
    %141 = arith.addf %134, %140 : vector<8x64xf32>
    %cst_59 = arith.constant 0.797884583 : f32
    %142 = vector.broadcast %cst_59 : f32 to vector<8x64xf32>
    %143 = arith.mulf %142, %141 : vector<8x64xf32>
    %144 = math.tanh %143 : vector<8x64xf32>
    %cst_60 = arith.constant 1.000000e+00 : f32
    %145 = vector.broadcast %cst_60 : f32 to vector<8x64xf32>
    %146 = arith.addf %145, %144 : vector<8x64xf32>
    %147 = arith.mulf %136, %146 : vector<8x64xf32>
    %c0_61 = arith.constant 0 : index
    %c0_62 = arith.constant 0 : index
    %c0_63 = arith.constant 0 : index
    %148 = vector.load %arg13[%c0_61, %c0_62, %c0_63] : memref<2x64x32xf32, #tpu.memory_space<vmem>>, vector<1x64x32xf32>
    %149 = vector.shape_cast %148 : vector<1x64x32xf32> to vector<64x32xf32>
    %150 = arith.truncf %147 : vector<8x64xf32> to vector<8x64xbf16>
    %151 = arith.truncf %149 : vector<64x32xf32> to vector<64x32xbf16>
    %cst_64 = arith.constant dense<0.000000e+00> : vector<8x32xf32>
    %152 = tpu.matmul %150, %151, %cst_64 {dimension_numbers = #tpu.dot_dimension_numbers<[1], [0], [0], [1], [0, 0, 1, 1], [], []>} : vector<8x64xbf16>, vector<64x32xbf16>, vector<8x32xf32> -> vector<8x32xf32>
    %c0_65 = arith.constant 0 : index
    %c0_66 = arith.constant 0 : index
    %c0_67 = arith.constant 0 : index
    %153 = vector.load %arg14[%c0_65, %c0_66, %c0_67] : memref<2x1x32xf32, #tpu.memory_space<vmem>>, vector<1x1x32xf32>
    %154 = vector.shape_cast %153 : vector<1x1x32xf32> to vector<1x32xf32>
    %155 = vector.broadcast %154 : vector<1x32xf32> to vector<8x32xf32>
    %156 = arith.addf %152, %155 : vector<8x32xf32>
    %157 = arith.addf %125, %156 : vector<8x32xf32>
    %c0_68 = arith.constant 0 : index
    %c0_69 = arith.constant 0 : index
    %c0_70 = arith.constant 0 : index
    %158 = vector.load %arg15[%c0_68, %c0_69, %c0_70] : memref<2x1x32xf32, #tpu.memory_space<vmem>>, vector<1x1x32xf32>
    %159 = vector.shape_cast %158 : vector<1x1x32xf32> to vector<1x32xf32>
    %c0_71 = arith.constant 0 : index
    %c0_72 = arith.constant 0 : index
    %c0_73 = arith.constant 0 : index
    %160 = vector.load %arg16[%c0_71, %c0_72, %c0_73] : memref<2x1x32xf32, #tpu.memory_space<vmem>>, vector<1x1x32xf32>
    %161 = vector.shape_cast %160 : vector<1x1x32xf32> to vector<1x32xf32>
    %cst_74 = arith.constant dense<0.000000e+00> : vector<8xf32>
    %162 = vector.multi_reduction <add>, %157, %cst_74 [1] : vector<8x32xf32> to vector<8xf32>
    %163 = vector.shape_cast %162 : vector<8xf32> to vector<8x1xf32>
    %cst_75 = arith.constant 3.200000e+01 : f32
    %164 = vector.broadcast %cst_75 : f32 to vector<8x1xf32>
    %165 = arith.divf %163, %164 : vector<8x1xf32>
    %166 = vector.broadcast %165 : vector<8x1xf32> to vector<8x32xf32>
    %167 = arith.subf %157, %166 : vector<8x32xf32>
    %168 = arith.mulf %167, %167 : vector<8x32xf32>
    %cst_76 = arith.constant dense<0.000000e+00> : vector<8xf32>
    %169 = vector.multi_reduction <add>, %168, %cst_76 [1] : vector<8x32xf32> to vector<8xf32>
    %170 = vector.shape_cast %169 : vector<8xf32> to vector<8x1xf32>
    %cst_77 = arith.constant 3.200000e+01 : f32
    %171 = vector.broadcast %cst_77 : f32 to vector<8x1xf32>
    %172 = arith.divf %170, %171 : vector<8x1xf32>
    %173 = vector.broadcast %165 : vector<8x1xf32> to vector<8x32xf32>
    %174 = arith.subf %157, %173 : vector<8x32xf32>
    %cst_78 = arith.constant 9.99999996E-13 : f32
    %175 = vector.broadcast %cst_78 : f32 to vector<8x1xf32>
    %176 = arith.addf %172, %175 : vector<8x1xf32>
    %177 = math.rsqrt %176 : vector<8x1xf32>
    %178 = vector.broadcast %177 : vector<8x1xf32> to vector<8x32xf32>
    %179 = arith.mulf %174, %178 : vector<8x32xf32>
    %180 = vector.broadcast %159 : vector<1x32xf32> to vector<8x32xf32>
    %181 = arith.mulf %179, %180 : vector<8x32xf32>
    %182 = vector.broadcast %161 : vector<1x32xf32> to vector<8x32xf32>
    %183 = arith.addf %181, %182 : vector<8x32xf32>
    %c1 = arith.constant 1 : index
    %c0_79 = arith.constant 0 : index
    %c0_80 = arith.constant 0 : index
    %184 = vector.load %arg5[%c1, %c0_79, %c0_80] : memref<2x32x96xf32, #tpu.memory_space<vmem>>, vector<1x32x96xf32>
    %185 = vector.shape_cast %184 : vector<1x32x96xf32> to vector<32x96xf32>
    %186 = arith.truncf %183 : vector<8x32xf32> to vector<8x32xbf16>
    %187 = arith.truncf %185 : vector<32x96xf32> to vector<32x96xbf16>
    %cst_81 = arith.constant dense<0.000000e+00> : vector<8x96xf32>
    %188 = tpu.matmul %186, %187, %cst_81 {dimension_numbers = #tpu.dot_dimension_numbers<[1], [0], [0], [1], [0, 0, 1, 1], [], []>} : vector<8x32xbf16>, vector<32x96xbf16>, vector<8x96xf32> -> vector<8x96xf32>
    %c1_82 = arith.constant 1 : index
    %c0_83 = arith.constant 0 : index
    %c0_84 = arith.constant 0 : index
    %189 = vector.load %arg6[%c1_82, %c0_83, %c0_84] : memref<2x1x96xf32, #tpu.memory_space<vmem>>, vector<1x1x96xf32>
    %190 = vector.shape_cast %189 : vector<1x1x96xf32> to vector<1x96xf32>
    %191 = vector.broadcast %190 : vector<1x96xf32> to vector<8x96xf32>
    %192 = arith.addf %188, %191 : vector<8x96xf32>
    %193 = vector.extract_strided_slice %192 {offsets = [0, 0], sizes = [8, 16], strides = [1, 1]} : vector<8x96xf32> to vector<8x16xf32>
    %194 = vector.extract_strided_slice %192 {offsets = [0, 32], sizes = [8, 16], strides = [1, 1]} : vector<8x96xf32> to vector<8x16xf32>
    %195 = vector.extract_strided_slice %192 {offsets = [0, 64], sizes = [8, 16], strides = [1, 1]} : vector<8x96xf32> to vector<8x16xf32>
    %196 = tpu.transpose %194, [1, 0] : vector<8x16xf32> -> vector<16x8xf32>
    %197 = arith.truncf %193 : vector<8x16xf32> to vector<8x16xbf16>
    %198 = arith.truncf %196 : vector<16x8xf32> to vector<16x8xbf16>
    %cst_85 = arith.constant dense<0.000000e+00> : vector<8x8xf32>
    %199 = tpu.matmul %197, %198, %cst_85 {dimension_numbers = #tpu.dot_dimension_numbers<[1], [0], [0], [1], [0, 0, 1, 1], [], []>} : vector<8x16xbf16>, vector<16x8xbf16>, vector<8x8xf32> -> vector<8x8xf32>
    %cst_86 = arith.constant 2.500000e-01 : f32
    %200 = vector.broadcast %cst_86 : f32 to vector<8x8xf32>
    %201 = arith.mulf %199, %200 : vector<8x8xf32>
    %202 = vector.broadcast %31 : vector<1x8xf32> to vector<8x8xf32>
    %203 = arith.addf %201, %202 : vector<8x8xf32>
    %cst_87 = arith.constant dense<0xFF800000> : vector<8xf32>
    %204 = vector.multi_reduction <maximumf>, %203, %cst_87 [1] : vector<8x8xf32> to vector<8xf32>
    %205 = vector.shape_cast %204 : vector<8xf32> to vector<8x1xf32>
    %206 = vector.broadcast %205 : vector<8x1xf32> to vector<8x8xf32>
    %207 = arith.subf %203, %206 : vector<8x8xf32>
    %208 = math.exp %207 : vector<8x8xf32>
    %cst_88 = arith.constant dense<0.000000e+00> : vector<8xf32>
    %209 = vector.multi_reduction <add>, %208, %cst_88 [1] : vector<8x8xf32> to vector<8xf32>
    %210 = vector.shape_cast %209 : vector<8xf32> to vector<8x1xf32>
    %211 = tpu.reciprocal %210 {approx = true} : vector<8x1xf32> -> vector<8x1xf32>
    %212 = vector.broadcast %211 : vector<8x1xf32> to vector<8x8xf32>
    %213 = arith.mulf %208, %212 : vector<8x8xf32>
    %214 = arith.truncf %213 : vector<8x8xf32> to vector<8x8xbf16>
    %215 = arith.truncf %195 : vector<8x16xf32> to vector<8x16xbf16>
    %cst_89 = arith.constant dense<0.000000e+00> : vector<8x16xf32>
    %216 = tpu.matmul %214, %215, %cst_89 {dimension_numbers = #tpu.dot_dimension_numbers<[1], [0], [0], [1], [0, 0, 1, 1], [], []>} : vector<8x8xbf16>, vector<8x16xbf16>, vector<8x16xf32> -> vector<8x16xf32>
    %217 = vector.extract_strided_slice %192 {offsets = [0, 16], sizes = [8, 16], strides = [1, 1]} : vector<8x96xf32> to vector<8x16xf32>
    %218 = vector.extract_strided_slice %192 {offsets = [0, 48], sizes = [8, 16], strides = [1, 1]} : vector<8x96xf32> to vector<8x16xf32>
    %219 = vector.extract_strided_slice %192 {offsets = [0, 80], sizes = [8, 16], strides = [1, 1]} : vector<8x96xf32> to vector<8x16xf32>
    %220 = tpu.transpose %218, [1, 0] : vector<8x16xf32> -> vector<16x8xf32>
    %221 = arith.truncf %217 : vector<8x16xf32> to vector<8x16xbf16>
    %222 = arith.truncf %220 : vector<16x8xf32> to vector<16x8xbf16>
    %cst_90 = arith.constant dense<0.000000e+00> : vector<8x8xf32>
    %223 = tpu.matmul %221, %222, %cst_90 {dimension_numbers = #tpu.dot_dimension_numbers<[1], [0], [0], [1], [0, 0, 1, 1], [], []>} : vector<8x16xbf16>, vector<16x8xbf16>, vector<8x8xf32> -> vector<8x8xf32>
    %cst_91 = arith.constant 2.500000e-01 : f32
    %224 = vector.broadcast %cst_91 : f32 to vector<8x8xf32>
    %225 = arith.mulf %223, %224 : vector<8x8xf32>
    %226 = vector.broadcast %31 : vector<1x8xf32> to vector<8x8xf32>
    %227 = arith.addf %225, %226 : vector<8x8xf32>
    %cst_92 = arith.constant dense<0xFF800000> : vector<8xf32>
    %228 = vector.multi_reduction <maximumf>, %227, %cst_92 [1] : vector<8x8xf32> to vector<8xf32>
    %229 = vector.shape_cast %228 : vector<8xf32> to vector<8x1xf32>
    %230 = vector.broadcast %229 : vector<8x1xf32> to vector<8x8xf32>
    %231 = arith.subf %227, %230 : vector<8x8xf32>
    %232 = math.exp %231 : vector<8x8xf32>
    %cst_93 = arith.constant dense<0.000000e+00> : vector<8xf32>
    %233 = vector.multi_reduction <add>, %232, %cst_93 [1] : vector<8x8xf32> to vector<8xf32>
    %234 = vector.shape_cast %233 : vector<8xf32> to vector<8x1xf32>
    %235 = tpu.reciprocal %234 {approx = true} : vector<8x1xf32> -> vector<8x1xf32>
    %236 = vector.broadcast %235 : vector<8x1xf32> to vector<8x8xf32>
    %237 = arith.mulf %232, %236 : vector<8x8xf32>
    %238 = arith.truncf %237 : vector<8x8xf32> to vector<8x8xbf16>
    %239 = arith.truncf %219 : vector<8x16xf32> to vector<8x16xbf16>
    %cst_94 = arith.constant dense<0.000000e+00> : vector<8x16xf32>
    %240 = tpu.matmul %238, %239, %cst_94 {dimension_numbers = #tpu.dot_dimension_numbers<[1], [0], [0], [1], [0, 0, 1, 1], [], []>} : vector<8x8xbf16>, vector<8x16xbf16>, vector<8x16xf32> -> vector<8x16xf32>
    %241 = tpu.concatenate %216, %240 in 1 : vector<8x16xf32>, vector<8x16xf32> -> vector<8x32xf32>
    %c1_95 = arith.constant 1 : index
    %c0_96 = arith.constant 0 : index
    %c0_97 = arith.constant 0 : index
    %242 = vector.load %arg7[%c1_95, %c0_96, %c0_97] : memref<2x32x32xf32, #tpu.memory_space<vmem>>, vector<1x32x32xf32>
    %243 = vector.shape_cast %242 : vector<1x32x32xf32> to vector<32x32xf32>
    %244 = arith.truncf %241 : vector<8x32xf32> to vector<8x32xbf16>
    %245 = arith.truncf %243 : vector<32x32xf32> to vector<32x32xbf16>
    %cst_98 = arith.constant dense<0.000000e+00> : vector<8x32xf32>
    %246 = tpu.matmul %244, %245, %cst_98 {dimension_numbers = #tpu.dot_dimension_numbers<[1], [0], [0], [1], [0, 0, 1, 1], [], []>} : vector<8x32xbf16>, vector<32x32xbf16>, vector<8x32xf32> -> vector<8x32xf32>
    %c1_99 = arith.constant 1 : index
    %c0_100 = arith.constant 0 : index
    %c0_101 = arith.constant 0 : index
    %247 = vector.load %arg8[%c1_99, %c0_100, %c0_101] : memref<2x1x32xf32, #tpu.memory_space<vmem>>, vector<1x1x32xf32>
    %248 = vector.shape_cast %247 : vector<1x1x32xf32> to vector<1x32xf32>
    %249 = vector.broadcast %248 : vector<1x32xf32> to vector<8x32xf32>
    %250 = arith.addf %246, %249 : vector<8x32xf32>
    %251 = arith.addf %183, %250 : vector<8x32xf32>
    %c1_102 = arith.constant 1 : index
    %c0_103 = arith.constant 0 : index
    %c0_104 = arith.constant 0 : index
    %252 = vector.load %arg9[%c1_102, %c0_103, %c0_104] : memref<2x1x32xf32, #tpu.memory_space<vmem>>, vector<1x1x32xf32>
    %253 = vector.shape_cast %252 : vector<1x1x32xf32> to vector<1x32xf32>
    %c1_105 = arith.constant 1 : index
    %c0_106 = arith.constant 0 : index
    %c0_107 = arith.constant 0 : index
    %254 = vector.load %arg10[%c1_105, %c0_106, %c0_107] : memref<2x1x32xf32, #tpu.memory_space<vmem>>, vector<1x1x32xf32>
    %255 = vector.shape_cast %254 : vector<1x1x32xf32> to vector<1x32xf32>
    %cst_108 = arith.constant dense<0.000000e+00> : vector<8xf32>
    %256 = vector.multi_reduction <add>, %251, %cst_108 [1] : vector<8x32xf32> to vector<8xf32>
    %257 = vector.shape_cast %256 : vector<8xf32> to vector<8x1xf32>
    %cst_109 = arith.constant 3.200000e+01 : f32
    %258 = vector.broadcast %cst_109 : f32 to vector<8x1xf32>
    %259 = arith.divf %257, %258 : vector<8x1xf32>
    %260 = vector.broadcast %259 : vector<8x1xf32> to vector<8x32xf32>
    %261 = arith.subf %251, %260 : vector<8x32xf32>
    %262 = arith.mulf %261, %261 : vector<8x32xf32>
    %cst_110 = arith.constant dense<0.000000e+00> : vector<8xf32>
    %263 = vector.multi_reduction <add>, %262, %cst_110 [1] : vector<8x32xf32> to vector<8xf32>
    %264 = vector.shape_cast %263 : vector<8xf32> to vector<8x1xf32>
    %cst_111 = arith.constant 3.200000e+01 : f32
    %265 = vector.broadcast %cst_111 : f32 to vector<8x1xf32>
    %266 = arith.divf %264, %265 : vector<8x1xf32>
    %267 = vector.broadcast %259 : vector<8x1xf32> to vector<8x32xf32>
    %268 = arith.subf %251, %267 : vector<8x32xf32>
    %cst_112 = arith.constant 9.99999996E-13 : f32
    %269 = vector.broadcast %cst_112 : f32 to vector<8x1xf32>
    %270 = arith.addf %266, %269 : vector<8x1xf32>
    %271 = math.rsqrt %270 : vector<8x1xf32>
    %272 = vector.broadcast %271 : vector<8x1xf32> to vector<8x32xf32>
    %273 = arith.mulf %268, %272 : vector<8x32xf32>
    %274 = vector.broadcast %253 : vector<1x32xf32> to vector<8x32xf32>
    %275 = arith.mulf %273, %274 : vector<8x32xf32>
    %276 = vector.broadcast %255 : vector<1x32xf32> to vector<8x32xf32>
    %277 = arith.addf %275, %276 : vector<8x32xf32>
    %c1_113 = arith.constant 1 : index
    %c0_114 = arith.constant 0 : index
    %c0_115 = arith.constant 0 : index
    %278 = vector.load %arg11[%c1_113, %c0_114, %c0_115] : memref<2x32x64xf32, #tpu.memory_space<vmem>>, vector<1x32x64xf32>
    %279 = vector.shape_cast %278 : vector<1x32x64xf32> to vector<32x64xf32>
    %280 = arith.truncf %277 : vector<8x32xf32> to vector<8x32xbf16>
    %281 = arith.truncf %279 : vector<32x64xf32> to vector<32x64xbf16>
    %cst_116 = arith.constant dense<0.000000e+00> : vector<8x64xf32>
    %282 = tpu.matmul %280, %281, %cst_116 {dimension_numbers = #tpu.dot_dimension_numbers<[1], [0], [0], [1], [0, 0, 1, 1], [], []>} : vector<8x32xbf16>, vector<32x64xbf16>, vector<8x64xf32> -> vector<8x64xf32>
    %c1_117 = arith.constant 1 : index
    %c0_118 = arith.constant 0 : index
    %c0_119 = arith.constant 0 : index
    %283 = vector.load %arg12[%c1_117, %c0_118, %c0_119] : memref<2x1x64xf32, #tpu.memory_space<vmem>>, vector<1x1x64xf32>
    %284 = vector.shape_cast %283 : vector<1x1x64xf32> to vector<1x64xf32>
    %285 = vector.broadcast %284 : vector<1x64xf32> to vector<8x64xf32>
    %286 = arith.addf %282, %285 : vector<8x64xf32>
    %cst_120 = arith.constant 5.000000e-01 : f32
    %287 = vector.broadcast %cst_120 : f32 to vector<8x64xf32>
    %288 = arith.mulf %287, %286 : vector<8x64xf32>
    %cst_121 = arith.constant 4.471500e-02 : f32
    %289 = vector.broadcast %cst_121 : f32 to vector<8x64xf32>
    %290 = arith.mulf %289, %286 : vector<8x64xf32>
    %291 = arith.mulf %290, %286 : vector<8x64xf32>
    %292 = arith.mulf %291, %286 : vector<8x64xf32>
    %293 = arith.addf %286, %292 : vector<8x64xf32>
    %cst_122 = arith.constant 0.797884583 : f32
    %294 = vector.broadcast %cst_122 : f32 to vector<8x64xf32>
    %295 = arith.mulf %294, %293 : vector<8x64xf32>
    %296 = math.tanh %295 : vector<8x64xf32>
    %cst_123 = arith.constant 1.000000e+00 : f32
    %297 = vector.broadcast %cst_123 : f32 to vector<8x64xf32>
    %298 = arith.addf %297, %296 : vector<8x64xf32>
    %299 = arith.mulf %288, %298 : vector<8x64xf32>
    %c1_124 = arith.constant 1 : index
    %c0_125 = arith.constant 0 : index
    %c0_126 = arith.constant 0 : index
    %300 = vector.load %arg13[%c1_124, %c0_125, %c0_126] : memref<2x64x32xf32, #tpu.memory_space<vmem>>, vector<1x64x32xf32>
    %301 = vector.shape_cast %300 : vector<1x64x32xf32> to vector<64x32xf32>
    %302 = arith.truncf %299 : vector<8x64xf32> to vector<8x64xbf16>
    %303 = arith.truncf %301 : vector<64x32xf32> to vector<64x32xbf16>
    %cst_127 = arith.constant dense<0.000000e+00> : vector<8x32xf32>
    %304 = tpu.matmul %302, %303, %cst_127 {dimension_numbers = #tpu.dot_dimension_numbers<[1], [0], [0], [1], [0, 0, 1, 1], [], []>} : vector<8x64xbf16>, vector<64x32xbf16>, vector<8x32xf32> -> vector<8x32xf32>
    %c1_128 = arith.constant 1 : index
    %c0_129 = arith.constant 0 : index
    %c0_130 = arith.constant 0 : index
    %305 = vector.load %arg14[%c1_128, %c0_129, %c0_130] : memref<2x1x32xf32, #tpu.memory_space<vmem>>, vector<1x1x32xf32>
    %306 = vector.shape_cast %305 : vector<1x1x32xf32> to vector<1x32xf32>
    %307 = vector.broadcast %306 : vector<1x32xf32> to vector<8x32xf32>
    %308 = arith.addf %304, %307 : vector<8x32xf32>
    %309 = arith.addf %277, %308 : vector<8x32xf32>
    %c1_131 = arith.constant 1 : index
    %c0_132 = arith.constant 0 : index
    %c0_133 = arith.constant 0 : index
    %310 = vector.load %arg15[%c1_131, %c0_132, %c0_133] : memref<2x1x32xf32, #tpu.memory_space<vmem>>, vector<1x1x32xf32>
    %311 = vector.shape_cast %310 : vector<1x1x32xf32> to vector<1x32xf32>
    %c1_134 = arith.constant 1 : index
    %c0_135 = arith.constant 0 : index
    %c0_136 = arith.constant 0 : index
    %312 = vector.load %arg16[%c1_134, %c0_135, %c0_136] : memref<2x1x32xf32, #tpu.memory_space<vmem>>, vector<1x1x32xf32>
    %313 = vector.shape_cast %312 : vector<1x1x32xf32> to vector<1x32xf32>
    %cst_137 = arith.constant dense<0.000000e+00> : vector<8xf32>
    %314 = vector.multi_reduction <add>, %309, %cst_137 [1] : vector<8x32xf32> to vector<8xf32>
    %315 = vector.shape_cast %314 : vector<8xf32> to vector<8x1xf32>
    %cst_138 = arith.constant 3.200000e+01 : f32
    %316 = vector.broadcast %cst_138 : f32 to vector<8x1xf32>
    %317 = arith.divf %315, %316 : vector<8x1xf32>
    %318 = vector.broadcast %317 : vector<8x1xf32> to vector<8x32xf32>
    %319 = arith.subf %309, %318 : vector<8x32xf32>
    %320 = arith.mulf %319, %319 : vector<8x32xf32>
    %cst_139 = arith.constant dense<0.000000e+00> : vector<8xf32>
    %321 = vector.multi_reduction <add>, %320, %cst_139 [1] : vector<8x32xf32> to vector<8xf32>
    %322 = vector.shape_cast %321 : vector<8xf32> to vector<8x1xf32>
    %cst_140 = arith.constant 3.200000e+01 : f32
    %323 = vector.broadcast %cst_140 : f32 to vector<8x1xf32>
    %324 = arith.divf %322, %323 : vector<8x1xf32>
    %325 = vector.broadcast %317 : vector<8x1xf32> to vector<8x32xf32>
    %326 = arith.subf %309, %325 : vector<8x32xf32>
    %cst_141 = arith.constant 9.99999996E-13 : f32
    %327 = vector.broadcast %cst_141 : f32 to vector<8x1xf32>
    %328 = arith.addf %324, %327 : vector<8x1xf32>
    %329 = math.rsqrt %328 : vector<8x1xf32>
    %330 = vector.broadcast %329 : vector<8x1xf32> to vector<8x32xf32>
    %331 = arith.mulf %326, %330 : vector<8x32xf32>
    %332 = vector.broadcast %311 : vector<1x32xf32> to vector<8x32xf32>
    %333 = arith.mulf %331, %332 : vector<8x32xf32>
    %334 = vector.broadcast %313 : vector<1x32xf32> to vector<8x32xf32>
    %335 = arith.addf %333, %334 : vector<8x32xf32>
    %c0_142 = arith.constant 0 : index
    %c0_143 = arith.constant 0 : index
    %c0_144 = arith.constant 0 : index
    %336 = vector.load %arg17[%c0_142, %c0_143, %c0_144] : memref<1x8x32xf32, #tpu.memory_space<vmem>>, vector<1x8x32xf32>
    %337 = vector.shape_cast %336 : vector<1x8x32xf32> to vector<8x32xf32>
    %338 = vector.shape_cast %335 : vector<8x32xf32> to vector<1x8x32xf32>
    tpu.vector_store %arg17[%c0_142, %c0_143, %c0_144], %338 {strides = array<i32>} : memref<1x8x32xf32, #tpu.memory_space<vmem>>, vector<1x8x32xf32>,
    return
  }
  func.func @transform_0(%arg0: i32) -> (i32, i32, i32) {
    %c0_i32 = arith.constant 0 : i32
    %c0_i32_0 = arith.constant 0 : i32
    %c0_i32_1 = arith.constant 0 : i32
    return %arg0, %c0_i32, %c0_i32_0 : i32, i32, i32
  }
  func.func @transform_1(%arg0: i32) -> (i32, i32, i32) {
    %c0_i32 = arith.constant 0 : i32
    %c0_i32_0 = arith.constant 0 : i32
    %c0_i32_1 = arith.constant 0 : i32
    return %arg0, %c0_i32, %c0_i32_0 : i32, i32, i32
  }
  func.func @transform_2(%arg0: i32) -> (i32, i32) {
    %c0_i32 = arith.constant 0 : i32
    %c0_i32_0 = arith.constant 0 : i32
    %c0_i32_1 = arith.constant 0 : i32
    return %c0_i32, %c0_i32_0 : i32, i32
  }
  func.func @transform_3(%arg0: i32) -> (i32, i32) {
    %c0_i32 = arith.constant 0 : i32
    %c0_i32_0 = arith.constant 0 : i32
    %c0_i32_1 = arith.constant 0 : i32
    return %c0_i32, %c0_i32_0 : i32, i32
  }
  func.func @transform_4(%arg0: i32) -> (i32, i32, i32) {
    %c0_i32 = arith.constant 0 : i32
    %c0_i32_0 = arith.constant 0 : i32
    %c0_i32_1 = arith.constant 0 : i32
    %c0_i32_2 = arith.constant 0 : i32
    return %c0_i32, %c0_i32_0, %c0_i32_1 : i32, i32, i32
  }
  func.func @transform_5(%arg0: i32) -> (i32, i32, i32) {
    %c0_i32 = arith.constant 0 : i32
    %c0_i32_0 = arith.constant 0 : i32
    %c0_i32_1 = arith.constant 0 : i32
    %c0_i32_2 = arith.constant 0 : i32
    return %c0_i32, %c0_i32_0, %c0_i32_1 : i32, i32, i32
  }
  func.func @transform_6(%arg0: i32) -> (i32, i32, i32) {
    %c0_i32 = arith.constant 0 : i32
    %c0_i32_0 = arith.constant 0 : i32
    %c0_i32_1 = arith.constant 0 : i32
    %c0_i32_2 = arith.constant 0 : i32
    return %c0_i32, %c0_i32_0, %c0_i32_1 : i32, i32, i32
  }
  func.func @transform_7(%arg0: i32) -> (i32, i32, i32) {
    %c0_i32 = arith.constant 0 : i32
    %c0_i32_0 = arith.constant 0 : i32
    %c0_i32_1 = arith.constant 0 : i32
    %c0_i32_2 = arith.constant 0 : i32
    return %c0_i32, %c0_i32_0, %c0_i32_1 : i32, i32, i32
  }
  func.func @transform_8(%arg0: i32) -> (i32, i32, i32) {
    %c0_i32 = arith.constant 0 : i32
    %c0_i32_0 = arith.constant 0 : i32
    %c0_i32_1 = arith.constant 0 : i32
    %c0_i32_2 = arith.constant 0 : i32
    return %c0_i32, %c0_i32_0, %c0_i32_1 : i32, i32, i32
  }
  func.func @transform_9(%arg0: i32) -> (i32, i32, i32) {
    %c0_i32 = arith.constant 0 : i32
    %c0_i32_0 = arith.constant 0 : i32
    %c0_i32_1 = arith.constant 0 : i32
    %c0_i32_2 = arith.constant 0 : i32
    return %c0_i32, %c0_i32_0, %c0_i32_1 : i32, i32, i32
  }
  func.func @transform_10(%arg0: i32) -> (i32, i32, i32) {
    %c0_i32 = arith.constant 0 : i32
    %c0_i32_0 = arith.constant 0 : i32
    %c0_i32_1 = arith.constant 0 : i32
    %c0_i32_2 = arith.constant 0 : i32
    return %c0_i32, %c0_i32_0, %c0_i32_1 : i32, i32, i32
  }
  func.func @transform_11(%arg0: i32) -> (i32, i32, i32) {
    %c0_i32 = arith.constant 0 : i32
    %c0_i32_0 = arith.constant 0 : i32
    %c0_i32_1 = arith.constant 0 : i32
    %c0_i32_2 = arith.constant 0 : i32
    return %c0_i32, %c0_i32_0, %c0_i32_1 : i32, i32, i32
  }
  func.func @transform_12(%arg0: i32) -> (i32, i32, i32) {
    %c0_i32 = arith.constant 0 : i32
    %c0_i32_0 = arith.constant 0 : i32
    %c0_i32_1 = arith.constant 0 : i32
    %c0_i32_2 = arith.constant 0 : i32
    return %c0_i32, %c0_i32_0, %c0_i32_1 : i32, i32, i32
  }
  func.func @transform_13(%arg0: i32) -> (i32, i32, i32) {
    %c0_i32 = arith.constant 0 : i32
    %c0_i32_0 = arith.constant 0 : i32
    %c0_i32_1 = arith.constant 0 : i32
    %c0_i32_2 = arith.constant 0 : i32
    return %c0_i32, %c0_i32_0, %c0_i32_1 : i32, i32, i32
  }
  func.func @transform_14(%arg0: i32) -> (i32, i32, i32) {
    %c0_i32 = arith.constant 0 : i32
    %c0_i32_0 = arith.constant 0 : i32
    %c0_i32_1 = arith.constant 0 : i32
    %c0_i32_2 = arith.constant 0 : i32
    return %c0_i32, %c0_i32_0, %c0_i32_1 : i32, i32, i32
  }
  func.func @transform_15(%arg0: i32) -> (i32, i32, i32) {
    %c0_i32 = arith.constant 0 : i32
    %c0_i32_0 = arith.constant 0 : i32
    %c0_i32_1 = arith.constant 0 : i32
    %c0_i32_2 = arith.constant 0 : i32
    return %c0_i32, %c0_i32_0, %c0_i32_1 : i32, i32, i32
  }
  func.func @transform_16(%arg0: i32) -> (i32, i32, i32) {
    %c0_i32 = arith.constant 0 : i32
    %c0_i32_0 = arith.constant 0 : i32
    %c0_i32_1 = arith.constant 0 : i32
    return %arg0, %c0_i32, %c0_i32_0 : i32, i32, i32
  }
}

</mosaic_0001>

<llo_original>
// kernel: bert_classifier_forward.3
$region0: #{bert_classifier_forward.3}
  #allocation0 [shape = 'u32[]', space=smem, size = 0x4, offset = 0x4, fixed_abs, tag = 'smem constant byte address 0x4 - core index']
  #allocation1 [shape = 'u32[144,128]{1,0:T(1,128)}', space=vmem, size = 0x12000, scoped, tag = 'internal scratch']
  %s0 = inlined_call_operand.vmem [shape: f32[2,32], index: 0, kind: input, shape index: {}]
  %s1 = inlined_call_operand.vmem [shape: f32[32,32], index: 1, kind: input, shape index: {}]
  %s2 = inlined_call_operand.vmem [shape: f32[1,32], index: 2, kind: input, shape index: {}]
  %s3 = inlined_call_operand.vmem [shape: f32[32,3], index: 3, kind: input, shape index: {}]
  %s4 = inlined_call_operand.vmem [shape: f32[1,3], index: 4, kind: input, shape index: {}]
  %s5 = inlined_call_operand.vmem [shape: f32[2,3], index: 5, kind: input, shape index: {}]
  %s6 = inlined_call_operand.hbm [shape: f32[2,32], index: 6, kind: output, shape index: {0}]
  %s7 = inlined_call_operand.hbm [shape: f32[2,3], index: 7, kind: output, shape index: {1}]
  %s8 = inlined_call_operand.hbm [shape: f32[1,1], index: 8, kind: output, shape index: {2}]
  %9 = xla_tuple %s6, %s7, %s8
  %s10 = sld [smem:[#allocation0]]
  $region50: #{bert_classifier_forward.3} parent=0
    _
  %s12 = ssub.s32 1, %s10
  %s13 = scalar_select 0, %s12, %s10
  $region1: #{bert_classifier_forward.3} parent=0
    #allocation2 [shape = 'u8[1024]{0}', space=vmem, size = 0x400, scoped, tag = 'output window, operand 0, single buffered']
    #allocation3 [shape = 's32[1]{0}', space=sflag, size = 0x4, scoped, tag = 'scoped memory for bert_classifier_forward.3']
    #allocation4 [shape = 'u8[1024]{0}', space=vmem, size = 0x400, scoped, tag = 'output window, operand 1, single buffered']
    #allocation5 [shape = 's32[1]{0}', space=sflag, size = 0x4, scoped, tag = 'scoped memory for bert_classifier_forward.3']
    #allocation6 [shape = 'u8[512]{0}', space=vmem, size = 0x400, scoped, tag = 'output window, operand 2, single buffered']
    %14 = vsyncpa [#allocation3], 0
    %15 = vsyncpa [#allocation5], 0
    // Predicated region
    $region2: #{bert_classifier_forward.3} parent=1 // pred_check
      _
    $region3: #{bert_classifier_forward.3} parent=1 // pred_check_branch
      %17 = sbr.rel (0) target = $region5
    $region4: #{bert_classifier_forward.3} parent=1 // pred_region
      _
    $region5: #{bert_classifier_forward.3} parent=1 // pred_fallthru
      _
    // Predicated region
    $region6: #{bert_classifier_forward.3} parent=1 // pred_check
      _
    $region7: #{bert_classifier_forward.3} parent=1 // pred_check_branch
      %19 = sbr.rel (0) target = $region9
    $region8: #{bert_classifier_forward.3} parent=1 // pred_region
      _
    $region9: #{bert_classifier_forward.3} parent=1 // pred_fallthru
      _
    // Predicated region
    $region10: #{bert_classifier_forward.3} parent=1 // pred_check
      _
    $region11: #{bert_classifier_forward.3} parent=1 // pred_check_branch
      %21 = sbr.rel (0) target = $region13
    $region12: #{bert_classifier_forward.3} parent=1 // pred_region
      _
    $region13: #{bert_classifier_forward.3} parent=1 // pred_fallthru
      _
    // Predicated region
    $region14: #{bert_classifier_forward.3} parent=1 // pred_check
      _
    $region15: #{bert_classifier_forward.3} parent=1 // pred_check_branch
      %23 = sbr.rel (0) target = $region17
    $region16: #{bert_classifier_forward.3} parent=1 // pred_region
      _
    $region17: #{bert_classifier_forward.3} parent=1 // pred_fallthru
      _
    // Predicated region
    $region18: #{bert_classifier_forward.3} parent=1 // pred_check
      _
    $region19: #{bert_classifier_forward.3} parent=1 // pred_check_branch
      %25 = sbr.rel (0) target = $region21
    $region20: #{bert_classifier_forward.3} parent=1 // pred_region
      _
    $region21: #{bert_classifier_forward.3} parent=1 // pred_fallthru
      _
    // Predicated region
    $region22: #{bert_classifier_forward.3} parent=1 // pred_check
      _
    $region23: #{bert_classifier_forward.3} parent=1 // pred_check_branch
      %27 = sbr.rel (0) target = $region25
    $region24: #{bert_classifier_forward.3} parent=1 // pred_region
      _
    $region25: #{bert_classifier_forward.3} parent=1 // pred_fallthru
      _
    %v28 = vld [vmem:[%s0] sm:$0x3]
    %v29 = vld [vmem:[%s1] sm:$0xff]
    %v30 = vld [vmem:[%s1 + $0x8] sm:$0xff]
    %v31 = vld [vmem:[%s1 + $0x10] sm:$0xff]
    %v32 = vld [vmem:[%s1 + $0x18] sm:$0xff]
    %v33 = vld [vmem:[%s2] sm:$0x1]
    %v35 = vlaneseq
    %v36 = vshrl.u32 %v35, 7
    %v37 = vsub.s32 0, %v36
    %v38 = vrot.slane %v33, %v37
    %vm40 = vcmask 261120
    %v42 = vsel %vm40, %v28, 0
    %44 = vmatprep.subr.mxu0 0.0
    %45 = vmatpush1.msra.mxu0 %v29
    %46 = vmatprep.subr.mxu0 0.0
    %47 = vmatpush1.msra.mxu0 %v30
    %48 = vmatprep.subr.mxu0 0.0
    %49 = vmatpush1.msra.mxu0 %v31
    %50 = vmatprep.subr.mxu0 0.0
    %51 = vmatpush1.msra.mxu0 %v32
    %52 = vmatprep.subr.mxu0 0.0
    %53 = vmatpush1.msra.mxu0 0.0
    %54 = vmatprep.subr.mxu0 0.0
    %55 = vmatpush1.msra.mxu0 0.0
    %56 = vmatprep.subr.mxu0 0.0
    %57 = vmatpush1.msra.mxu0 0.0
    %58 = vmatprep.subr.mxu0 0.0
    %59 = vmatpush1.msra.mxu0 0.0
    %60 = vmatprep.subr.mxu0 0.0
    %61 = vmatpush1.msra.mxu0 0.0
    %62 = vmatprep.subr.mxu0 0.0
    %63 = vmatpush1.msra.mxu0 0.0
    %64 = vmatprep.subr.mxu0 0.0
    %65 = vmatpush1.msra.mxu0 0.0
    %66 = vmatprep.subr.mxu0 0.0
    %67 = vmatpush1.msra.mxu0 0.0
    %68 = vmatprep.subr.mxu0 0.0
    %69 = vmatpush1.msra.mxu0 0.0
    %70 = vmatprep.subr.mxu0 0.0
    %71 = vmatpush1.msra.mxu0 0.0
    %72 = vmatprep.subr.mxu0 0.0
    %73 = vmatpush1.msra.mxu0 0.0
    %74 = vmatprep.subr.mxu0 0.0
    %75 = vmatpush1.msra.mxu0 0.0
    %76 = vmatprep.subr.mxu0 0.0
    %77 = vmatpush1.msra.mxu0 0.0
    %78 = vmatprep.subr.mxu0 0.0
    %79 = vmatpush1.msra.mxu0 0.0
    %80 = vmatprep.subr.mxu0 0.0
    %81 = vmatpush1.msra.mxu0 0.0
    %82 = vmatprep.subr.mxu0 0.0
    %83 = vmatpush1.msra.mxu0 0.0
    %84 = vmatprep.subr.mxu0 0.0
    %85 = vmatpush1.msra.mxu0 0.0
    %86 = vmatprep.subr.mxu0 0.0
    %87 = vmatpush1.msra.mxu0 0.0
    %88 = vmatprep.subr.mxu0 0.0
    %89 = vmatpush1.msra.mxu0 0.0
    %90 = vmatprep.subr.mxu0 0.0
    %91 = vmatpush1.msra.mxu0 0.0
    %92 = vmatprep.subr.mxu0 0.0
    %93 = vmatpush1.msra.mxu0 0.0
    %94 = vmatprep.subr.mxu0 0.0
    %95 = vmatpush1.msra.mxu0 0.0
    %96 = vmatprep.subr.mxu0 0.0
    %97 = vmatpush1.msra.mxu0 0.0
    %98 = vmatprep.subr.mxu0 0.0
    %99 = vmatpush1.msra.mxu0 0.0
    %100 = vmatprep.subr.mxu0 0.0
    %101 = vmatpush1.msra.mxu0 0.0
    %102 = vmatprep.subr.mxu0 0.0
    %103 = vmatpush1.msra.mxu0 0.0
    %104 = vmatprep.subr.mxu0 0.0
    %105 = vmatpush1.msra.mxu0 0.0
    %106 = vmatprep.subr.mxu0 0.0
    %107 = vmatpush1.msra.mxu0 0.0
    %108 = vmatprep.mubr.f32.mxu0 0.0
    %109 = vmatmul.mubr.f32.gmra.mrb[0].mxu0 %v42
    %v110 = vpop.f32.mrb[0].mxu0
    %v111 = vadd.f32 %v38, %v110
    %v112 = vpop.f32.mrb[0].mxu0
    %113 = vdwg.mxu0
    %v114 = vtanh.pop %v111
    %vm115 = vcmask 254976
    %116 = vst.msk [vmem:[#allocation2] sm:$0x3] %vm115, %v114
    %v117 = vld [vmem:[%s3] sm:$0xff]
    %v118 = vld [vmem:[%s3 + $0x8] sm:$0xff]
    %v119 = vld [vmem:[%s3 + $0x10] sm:$0xff]
    %v120 = vld [vmem:[%s3 + $0x18] sm:$0xff]
    %v121 = vld [vmem:[%s4] sm:$0x1]
    %v123 = vlaneseq
    %v124 = vshrl.u32 %v123, 7
    %v125 = vsub.s32 0, %v124
    %v126 = vrot.slane %v121, %v125
    %v129 = vsel %vm40, %v114, 0
    %131 = vmatprep.subr.mxu0 0.0
    %132 = vmatpush1.msra.mxu0 %v117
    %133 = vmatprep.subr.mxu0 0.0
    %134 = vmatpush1.msra.mxu0 %v118
    %135 = vmatprep.subr.mxu0 0.0
    %136 = vmatpush1.msra.mxu0 %v119
    %137 = vmatprep.subr.mxu0 0.0
    %138 = vmatpush1.msra.mxu0 %v120
    %139 = vmatprep.subr.mxu0 0.0
    %140 = vmatpush1.msra.mxu0 0.0
    %141 = vmatprep.subr.mxu0 0.0
    %142 = vmatpush1.msra.mxu0 0.0
    %143 = vmatprep.subr.mxu0 0.0
    %144 = vmatpush1.msra.mxu0 0.0
    %145 = vmatprep.subr.mxu0 0.0
    %146 = vmatpush1.msra.mxu0 0.0
    %147 = vmatprep.subr.mxu0 0.0
    %148 = vmatpush1.msra.mxu0 0.0
    %149 = vmatprep.subr.mxu0 0.0
    %150 = vmatpush1.msra.mxu0 0.0
    %151 = vmatprep.subr.mxu0 0.0
    %152 = vmatpush1.msra.mxu0 0.0
    %153 = vmatprep.subr.mxu0 0.0
    %154 = vmatpush1.msra.mxu0 0.0
    %155 = vmatprep.subr.mxu0 0.0
    %156 = vmatpush1.msra.mxu0 0.0
    %157 = vmatprep.subr.mxu0 0.0
    %158 = vmatpush1.msra.mxu0 0.0
    %159 = vmatprep.subr.mxu0 0.0
    %160 = vmatpush1.msra.mxu0 0.0
    %161 = vmatprep.subr.mxu0 0.0
    %162 = vmatpush1.msra.mxu0 0.0
    %163 = vmatprep.subr.mxu0 0.0
    %164 = vmatpush1.msra.mxu0 0.0
    %165 = vmatprep.subr.mxu0 0.0
    %166 = vmatpush1.msra.mxu0 0.0
    %167 = vmatprep.subr.mxu0 0.0
    %168 = vmatpush1.msra.mxu0 0.0
    %169 = vmatprep.subr.mxu0 0.0
    %170 = vmatpush1.msra.mxu0 0.0
    %171 = vmatprep.subr.mxu0 0.0
    %172 = vmatpush1.msra.mxu0 0.0
    %173 = vmatprep.subr.mxu0 0.0
    %174 = vmatpush1.msra.mxu0 0.0
    %175 = vmatprep.subr.mxu0 0.0
    %176 = vmatpush1.msra.mxu0 0.0
    %177 = vmatprep.subr.mxu0 0.0
    %178 = vmatpush1.msra.mxu0 0.0
    %179 = vmatprep.subr.mxu0 0.0
    %180 = vmatpush1.msra.mxu0 0.0
    %181 = vmatprep.subr.mxu0 0.0
    %182 = vmatpush1.msra.mxu0 0.0
    %183 = vmatprep.subr.mxu0 0.0
    %184 = vmatpush1.msra.mxu0 0.0
    %185 = vmatprep.subr.mxu0 0.0
    %186 = vmatpush1.msra.mxu0 0.0
    %187 = vmatprep.subr.mxu0 0.0
    %188 = vmatpush1.msra.mxu0 0.0
    %189 = vmatprep.subr.mxu0 0.0
    %190 = vmatpush1.msra.mxu0 0.0
    %191 = vmatprep.subr.mxu0 0.0
    %192 = vmatpush1.msra.mxu0 0.0
    %193 = vmatprep.subr.mxu0 0.0
    %194 = vmatpush1.msra.mxu0 0.0
    %195 = vmatprep.mubr.f32.mxu0 0.0
    %196 = vmatmul.mubr.f32.gmra.mrb[0].mxu0 %v129
    %v197 = vpop.f32.mrb[0].mxu0
    %v198 = vadd.f32 %v126, %v197
    %v199 = vpop.f32.mrb[0].mxu0
    %200 = vdwg.mxu0
    %v201 = vsub.f32 0.0, %v198
    %v202 = vmul.f32 %v201, 1.442695
    %v203 = vpow.pop %v202
    %v204 = vadd.f32 %v203, 1.0
    %v205 = vrcp.pop %v204
    %v206 = vmul.f32 1.0, %v205
    %vm207 = vcmask 17408
    %208 = vst.msk [vmem:[#allocation4] sm:$0x3] %vm207, %v206
    %v209 = vld [vmem:[%s5] sm:$0x3]
    %v210 = vlog2.pop %v206
    %v211 = vmul.f32 %v210, 0.6931472
    %v212 = vmax.f32 %v211, -100.0
    %v213 = vsub.f32 1.0, %v206
    %v214 = vlog2.pop %v213
    %v215 = vmul.f32 %v214, 0.6931472
    %v216 = vmax.f32 %v215, -100.0
    %v217 = vmul.f32 %v209, %v212
    %v218 = vsub.f32 1.0, %v209
    %v219 = vmul.f32 %v218, %v216
    %v220 = vadd.f32 %v217, %v219
    %v221 = vsub.f32 0.0, %v220
    %v222 = vsel %vm207, %v221, 0.0
    %223 = vadd.xlane.f32.xlu0 %v222
    %v224 = vpop.xlane.xlu0 %223
    %v225 = vrot.slane %v224, 4
    %v226 = vadd.f32 %v224, %v225
    %v227 = vrot.slane %v226, 2
    %v228 = vadd.f32 %v226, %v227
    %v229 = vrot.slane %v228, 1
    %v230 = vadd.f32 %v228, %v229
    %s231 = vtos %v230
    %v232 = vstv %s231
    %v233 = vrcp.pop 6.0
    %v234 = vmul.f32 %v232, %v233
    %vm235 = vcmask 0
    %236 = vst.msk [vmem:[#allocation6] sm:$0x1] %vm235, %v234
    // Predicated region
    $region26: #{bert_classifier_forward.3} parent=1 // pred_check
      _
    $region27: #{bert_classifier_forward.3} parent=1 // pred_check_branch
      %238 = sbr.rel (0) target = $region29
    $region28: #{bert_classifier_forward.3} parent=1 // pred_region
      %s240 = ssub.s32 32, 32
      %241 = vsyncadd [#allocation3], %s240
      %s243 = sshll.u32 [#allocation2], 4
      %s244 = int_to_ptr.vmem [resolvable:$true] %s243
      %246 = dma.vmem_to_hbm [thread:$0]  %s244, 32, %s6, [#allocation3]
    $region29: #{bert_classifier_forward.3} parent=1 // pred_fallthru
      _
    // Predicated region
    $region30: #{bert_classifier_forward.3} parent=1 // pred_check
      _
    $region31: #{bert_classifier_forward.3} parent=1 // pred_check_branch
      %248 = sbr.rel (0) target = $region33
    $region32: #{bert_classifier_forward.3} parent=1 // pred_region
      %s250 = ssub.s32 32, 32
      %251 = vsyncadd [#allocation5], %s250
      %s253 = sshll.u32 [#allocation4], 4
      %s254 = int_to_ptr.vmem [resolvable:$true] %s253
      %256 = dma.vmem_to_hbm [thread:$0]  %s254, 32, %s7, [#allocation5]
    $region33: #{bert_classifier_forward.3} parent=1 // pred_fallthru
      _
    // Predicated region
    $region34: #{bert_classifier_forward.3} parent=1 // pred_check
      _
    $region35: #{bert_classifier_forward.3} parent=1 // pred_check_branch
      %258 = sbr.rel (0) target = $region37
    $region36: #{bert_classifier_forward.3} parent=1 // pred_region
      %s260 = ssub.s32 16, 16
      %261 = vsyncadd [#allocation5], %s260
      %s263 = sshll.u32 [#allocation6], 4
      %s264 = int_to_ptr.vmem [resolvable:$true] %s263
      %266 = dma.vmem_to_hbm [thread:$0]  %s264, 16, %s8, [#allocation5]
    $region37: #{bert_classifier_forward.3} parent=1 // pred_fallthru
      _
    // Predicated region
    $region38: #{bert_classifier_forward.3} parent=1 // pred_check
      _
    $region39: #{bert_classifier_forward.3} parent=1 // pred_check_branch
      %268 = sbr.rel (0) target = $region41
    $region40: #{bert_classifier_forward.3} parent=1 // pred_region
      %269 = dma.done [#allocation3], 32
    $region41: #{bert_classifier_forward.3} parent=1 // pred_fallthru
      _
    // Predicated region
    $region42: #{bert_classifier_forward.3} parent=1 // pred_check
      _
    $region43: #{bert_classifier_forward.3} parent=1 // pred_check_branch
      %271 = sbr.rel (0) target = $region45
    $region44: #{bert_classifier_forward.3} parent=1 // pred_region
      %272 = dma.done [#allocation5], 32
    $region45: #{bert_classifier_forward.3} parent=1 // pred_fallthru
      _
    // Predicated region
    $region46: #{bert_classifier_forward.3} parent=1 // pred_check
      _
    $region47: #{bert_classifier_forward.3} parent=1 // pred_check_branch
      %274 = sbr.rel (0) target = $region49
    $region48: #{bert_classifier_forward.3} parent=1 // pred_region
      %275 = dma.done [#allocation5], 16
    $region49: #{bert_classifier_forward.3} parent=1 // pred_fallthru
      _
    %276 = vsyncpa [#allocation3], 1
    %277 = vsyncpa [#allocation5], 1

// kernel: bert_classifier_forward.2
$region0: #{bert_classifier_forward.2}
  #allocation0 [shape = 'u32[]', space=smem, size = 0x4, offset = 0x4, fixed_abs, tag = 'smem constant byte address 0x4 - core index']
  #allocation1 [shape = 'u32[144,128]{1,0:T(1,128)}', space=vmem, size = 0x12000, scoped, tag = 'internal scratch']
  %s0 = inlined_call_operand.vmem [shape: f32[2,8,32], index: 0, kind: input, shape index: {}]
  %s1 = inlined_call_operand.vmem [shape: f32[2,1,8], index: 1, kind: input, shape index: {}]
  %s2 = inlined_call_operand.vmem [shape: f32[1,32], index: 2, kind: input, shape index: {}]
  %s3 = inlined_call_operand.vmem [shape: f32[1,32], index: 3, kind: input, shape index: {}]
  %s4 = inlined_call_operand.vmem [shape: f32[2,32,96], index: 4, kind: input, shape index: {}]
  %s5 = inlined_call_operand.vmem [shape: f32[2,1,96], index: 5, kind: input, shape index: {}]
  %s6 = inlined_call_operand.vmem [shape: f32[2,32,32], index: 6, kind: input, shape index: {}]
  %s7 = inlined_call_operand.vmem [shape: f32[2,1,32], index: 7, kind: input, shape index: {}]
  %s8 = inlined_call_operand.vmem [shape: f32[2,1,32], index: 8, kind: input, shape index: {}]
  %s9 = inlined_call_operand.vmem [shape: f32[2,1,32], index: 9, kind: input, shape index: {}]
  %s10 = inlined_call_operand.vmem [shape: f32[2,32,64], index: 10, kind: input, shape index: {}]
  %s11 = inlined_call_operand.vmem [shape: f32[2,1,64], index: 11, kind: input, shape index: {}]
  %s12 = inlined_call_operand.vmem [shape: f32[2,64,32], index: 12, kind: input, shape index: {}]
  %s13 = inlined_call_operand.vmem [shape: f32[2,1,32], index: 13, kind: input, shape index: {}]
  %s14 = inlined_call_operand.vmem [shape: f32[2,1,32], index: 14, kind: input, shape index: {}]
  %s15 = inlined_call_operand.vmem [shape: f32[2,1,32], index: 15, kind: input, shape index: {}]
  %s16 = inlined_call_operand.vmem [shape: f32[2,8,32], index: 16, kind: output, shape index: {}]
  %s17 = sld [smem:[#allocation0]]
  $region97: #{bert_classifier_forward.2} parent=0
    _
  %s19 = ssub.s32 1, %s17
  %s20 = scalar_select 0, %s19, %s17
  loop: start=0, step=1, limit=4
  $region2: #{bert_classifier_forward.2} parent=0 // loop_pre_header
    _
  $region3: #{bert_classifier_forward.2} parent=0 // loop_header
    %s22 = sphi 0, %s26
    %p23 = scmp.ge.s32.totalorder %s22, 4
    %s32 = sphi 0, %s34
    %s35 = sphi 0, %s32
    %s36 = sphi 0, %s35
    %s52 = sphi 0, %s36
    %s58 = sphi 0, %s60
    %s61 = sphi 0, %s58
    %s62 = sphi 0, %s61
    %s78 = sphi 0, %s62
    %s82 = sphi 0, %s82
    %s84 = sphi 0, %s82
    %s85 = sphi 0, %s84
    %s99 = sphi 0, %s85
    %s103 = sphi 0, %s103
    %s105 = sphi 0, %s103
    %s106 = sphi 0, %s105
    %s120 = sphi 0, %s106
    %s124 = sphi 0, %s124
    %s126 = sphi 0, %s124
    %s127 = sphi 0, %s126
    %s141 = sphi 0, %s127
    %s145 = sphi 0, %s145
    %s147 = sphi 0, %s145
    %s148 = sphi 0, %s147
    %s162 = sphi 0, %s148
    %s166 = sphi 0, %s166
    %s168 = sphi 0, %s166
    %s169 = sphi 0, %s168
    %s183 = sphi 0, %s169
    %s187 = sphi 0, %s187
    %s189 = sphi 0, %s187
    %s190 = sphi 0, %s189
    %s204 = sphi 0, %s190
    %s208 = sphi 0, %s208
    %s210 = sphi 0, %s208
    %s211 = sphi 0, %s210
    %s225 = sphi 0, %s211
    %s229 = sphi 0, %s229
    %s231 = sphi 0, %s229
    %s232 = sphi 0, %s231
    %s246 = sphi 0, %s232
    %s250 = sphi 0, %s250
    %s252 = sphi 0, %s250
    %s253 = sphi 0, %s252
    %s267 = sphi 0, %s253
    %s271 = sphi 0, %s271
    %s273 = sphi 0, %s271
    %s274 = sphi 0, %s273
    %s288 = sphi 0, %s274
    %s292 = sphi 0, %s292
    %s294 = sphi 0, %s292
    %s295 = sphi 0, %s294
    %s309 = sphi 0, %s295
    %s313 = sphi 0, %s313
    %s315 = sphi 0, %s313
    %s316 = sphi 0, %s315
    %s330 = sphi 0, %s316
    %s334 = sphi 0, %s334
    %s336 = sphi 0, %s334
    %s337 = sphi 0, %s336
    %s351 = sphi 0, %s337
    %s355 = sphi 0, %s355
    %s357 = sphi 0, %s355
    %s358 = sphi 0, %s357
    %s372 = sphi 0, %s358
    %s378 = sphi 0, %s380
    %s381 = sphi 0, %s378
    %s382 = sphi 0, %s381
    %s398 = sphi 0, %s382
  $region4: #{bert_classifier_forward.2} parent=0 // loop_header_branch
    %25 = sbr.rel (%p23) target = $region8
  $region5: #{bert_classifier_forward.2} parent=0 // loop_body
    %s27 = ssub.s32 %s22, 1
    %s28 = ssub.s32 %s22, 2
    %s29 = sadd.s32 %s22, 1
    %s30 = ssub.s32 %s22, %s29
    %p31 = scmp.eq.s32.totalorder %s30, 0
    %s33 = sadd.s32 %s32, 1
    %s34 = scalar_select %p31, %s32, %s33
    %p37 = pneg %p31
    %p38 = scmp.eq.s32.totalorder %s22, 1
    %p39 = por %p37, %p38
    %p40 = scmp.ne.s32.totalorder %s32, %s35
    %p41 = scmp.eq.s32.totalorder %s22, 0
    %p42 = por %p40, %p41
    %p43 = scmp.ne.s32.totalorder %s32, %s35
    %p44 = scmp.eq.s32.totalorder %s27, 1
    %p45 = por %p43, %p44
    %p46 = scmp.ne.s32.totalorder %s35, %s36
    %p47 = scmp.eq.s32.totalorder %s27, 0
    %p48 = por %p46, %p47
    %p49 = scmp.ne.s32.totalorder %s35, %s36
    %p50 = scmp.eq.s32.totalorder %s28, 1
    %p51 = por %p49, %p50
    %p53 = scmp.ne.s32.totalorder %s36, %s52
    %p54 = scmp.eq.s32.totalorder %s28, 0
    %p55 = por %p53, %p54
    %s56 = ssub.s32 %s22, %s29
    %p57 = scmp.eq.s32.totalorder %s56, 0
    %s59 = sadd.s32 %s58, 1
    %s60 = scalar_select %p57, %s58, %s59
    %p63 = pneg %p57
    %p64 = scmp.eq.s32.totalorder %s22, 1
    %p65 = por %p63, %p64
    %p66 = scmp.ne.s32.totalorder %s58, %s61
    %p67 = scmp.eq.s32.totalorder %s22, 0
    %p68 = por %p66, %p67
    %p69 = scmp.ne.s32.totalorder %s58, %s61
    %p70 = scmp.eq.s32.totalorder %s27, 1
    %p71 = por %p69, %p70
    %p72 = scmp.ne.s32.totalorder %s61, %s62
    %p73 = scmp.eq.s32.totalorder %s27, 0
    %p74 = por %p72, %p73
    %p75 = scmp.ne.s32.totalorder %s61, %s62
    %p76 = scmp.eq.s32.totalorder %s28, 1
    %p77 = por %p75, %p76
    %p79 = scmp.ne.s32.totalorder %s62, %s78
    %p80 = scmp.eq.s32.totalorder %s28, 0
    %p81 = por %p79, %p80
    %s83 = sadd.s32 %s82, 1
    %p86 = scmp.eq.s32.totalorder %s22, 1
    %p87 = scmp.ne.s32.totalorder %s82, %s84
    %p88 = scmp.eq.s32.totalorder %s22, 0
    %p89 = por %p87, %p88
    %p90 = scmp.ne.s32.totalorder %s82, %s84
    %p91 = scmp.eq.s32.totalorder %s27, 1
    %p92 = por %p90, %p91
    %p93 = scmp.ne.s32.totalorder %s84, %s85
    %p94 = scmp.eq.s32.totalorder %s27, 0
    %p95 = por %p93, %p94
    %p96 = scmp.ne.s32.totalorder %s84, %s85
    %p97 = scmp.eq.s32.totalorder %s28, 1
    %p98 = por %p96, %p97
    %p100 = scmp.ne.s32.totalorder %s85, %s99
    %p101 = scmp.eq.s32.totalorder %s28, 0
    %p102 = por %p100, %p101
    %s104 = sadd.s32 %s103, 1
    %p107 = scmp.eq.s32.totalorder %s22, 1
    %p108 = scmp.ne.s32.totalorder %s103, %s105
    %p109 = scmp.eq.s32.totalorder %s22, 0
    %p110 = por %p108, %p109
    %p111 = scmp.ne.s32.totalorder %s103, %s105
    %p112 = scmp.eq.s32.totalorder %s27, 1
    %p113 = por %p111, %p112
    %p114 = scmp.ne.s32.totalorder %s105, %s106
    %p115 = scmp.eq.s32.totalorder %s27, 0
    %p116 = por %p114, %p115
    %p117 = scmp.ne.s32.totalorder %s105, %s106
    %p118 = scmp.eq.s32.totalorder %s28, 1
    %p119 = por %p117, %p118
    %p121 = scmp.ne.s32.totalorder %s106, %s120
    %p122 = scmp.eq.s32.totalorder %s28, 0
    %p123 = por %p121, %p122
    %s125 = sadd.s32 %s124, 1
    %p128 = scmp.eq.s32.totalorder %s22, 1
    %p129 = scmp.ne.s32.totalorder %s124, %s126
    %p130 = scmp.eq.s32.totalorder %s22, 0
    %p131 = por %p129, %p130
    %p132 = scmp.ne.s32.totalorder %s124, %s126
    %p133 = scmp.eq.s32.totalorder %s27, 1
    %p134 = por %p132, %p133
    %p135 = scmp.ne.s32.totalorder %s126, %s127
    %p136 = scmp.eq.s32.totalorder %s27, 0
    %p137 = por %p135, %p136
    %p138 = scmp.ne.s32.totalorder %s126, %s127
    %p139 = scmp.eq.s32.totalorder %s28, 1
    %p140 = por %p138, %p139
    %p142 = scmp.ne.s32.totalorder %s127, %s141
    %p143 = scmp.eq.s32.totalorder %s28, 0
    %p144 = por %p142, %p143
    %s146 = sadd.s32 %s145, 1
    %p149 = scmp.eq.s32.totalorder %s22, 1
    %p150 = scmp.ne.s32.totalorder %s145, %s147
    %p151 = scmp.eq.s32.totalorder %s22, 0
    %p152 = por %p150, %p151
    %p153 = scmp.ne.s32.totalorder %s145, %s147
    %p154 = scmp.eq.s32.totalorder %s27, 1
    %p155 = por %p153, %p154
    %p156 = scmp.ne.s32.totalorder %s147, %s148
    %p157 = scmp.eq.s32.totalorder %s27, 0
    %p158 = por %p156, %p157
    %p159 = scmp.ne.s32.totalorder %s147, %s148
    %p160 = scmp.eq.s32.totalorder %s28, 1
    %p161 = por %p159, %p160
    %p163 = scmp.ne.s32.totalorder %s148, %s162
    %p164 = scmp.eq.s32.totalorder %s28, 0
    %p165 = por %p163, %p164
    %s167 = sadd.s32 %s166, 1
    %p170 = scmp.eq.s32.totalorder %s22, 1
    %p171 = scmp.ne.s32.totalorder %s166, %s168
    %p172 = scmp.eq.s32.totalorder %s22, 0
    %p173 = por %p171, %p172
    %p174 = scmp.ne.s32.totalorder %s166, %s168
    %p175 = scmp.eq.s32.totalorder %s27, 1
    %p176 = por %p174, %p175
    %p177 = scmp.ne.s32.totalorder %s168, %s169
    %p178 = scmp.eq.s32.totalorder %s27, 0
    %p179 = por %p177, %p178
    %p180 = scmp.ne.s32.totalorder %s168, %s169
    %p181 = scmp.eq.s32.totalorder %s28, 1
    %p182 = por %p180, %p181
    %p184 = scmp.ne.s32.totalorder %s169, %s183
    %p185 = scmp.eq.s32.totalorder %s28, 0
    %p186 = por %p184, %p185
    %s188 = sadd.s32 %s187, 1
    %p191 = scmp.eq.s32.totalorder %s22, 1
    %p192 = scmp.ne.s32.totalorder %s187, %s189
    %p193 = scmp.eq.s32.totalorder %s22, 0
    %p194 = por %p192, %p193
    %p195 = scmp.ne.s32.totalorder %s187, %s189
    %p196 = scmp.eq.s32.totalorder %s27, 1
    %p197 = por %p195, %p196
    %p198 = scmp.ne.s32.totalorder %s189, %s190
    %p199 = scmp.eq.s32.totalorder %s27, 0
    %p200 = por %p198, %p199
    %p201 = scmp.ne.s32.totalorder %s189, %s190
    %p202 = scmp.eq.s32.totalorder %s28, 1
    %p203 = por %p201, %p202
    %p205 = scmp.ne.s32.totalorder %s190, %s204
    %p206 = scmp.eq.s32.totalorder %s28, 0
    %p207 = por %p205, %p206
    %s209 = sadd.s32 %s208, 1
    %p212 = scmp.eq.s32.totalorder %s22, 1
    %p213 = scmp.ne.s32.totalorder %s208, %s210
    %p214 = scmp.eq.s32.totalorder %s22, 0
    %p215 = por %p213, %p214
    %p216 = scmp.ne.s32.totalorder %s208, %s210
    %p217 = scmp.eq.s32.totalorder %s27, 1
    %p218 = por %p216, %p217
    %p219 = scmp.ne.s32.totalorder %s210, %s211
    %p220 = scmp.eq.s32.totalorder %s27, 0
    %p221 = por %p219, %p220
    %p222 = scmp.ne.s32.totalorder %s210, %s211
    %p223 = scmp.eq.s32.totalorder %s28, 1
    %p224 = por %p222, %p223
    %p226 = scmp.ne.s32.totalorder %s211, %s225
    %p227 = scmp.eq.s32.totalorder %s28, 0
    %p228 = por %p226, %p227
    %s230 = sadd.s32 %s229, 1
    %p233 = scmp.eq.s32.totalorder %s22, 1
    %p234 = scmp.ne.s32.totalorder %s229, %s231
    %p235 = scmp.eq.s32.totalorder %s22, 0
    %p236 = por %p234, %p235
    %p237 = scmp.ne.s32.totalorder %s229, %s231
    %p238 = scmp.eq.s32.totalorder %s27, 1
    %p239 = por %p237, %p238
    %p240 = scmp.ne.s32.totalorder %s231, %s232
    %p241 = scmp.eq.s32.totalorder %s27, 0
    %p242 = por %p240, %p241
    %p243 = scmp.ne.s32.totalorder %s231, %s232
    %p244 = scmp.eq.s32.totalorder %s28, 1
    %p245 = por %p243, %p244
    %p247 = scmp.ne.s32.totalorder %s232, %s246
    %p248 = scmp.eq.s32.totalorder %s28, 0
    %p249 = por %p247, %p248
    %s251 = sadd.s32 %s250, 1
    %p254 = scmp.eq.s32.totalorder %s22, 1
    %p255 = scmp.ne.s32.totalorder %s250, %s252
    %p256 = scmp.eq.s32.totalorder %s22, 0
    %p257 = por %p255, %p256
    %p258 = scmp.ne.s32.totalorder %s250, %s252
    %p259 = scmp.eq.s32.totalorder %s27, 1
    %p260 = por %p258, %p259
    %p261 = scmp.ne.s32.totalorder %s252, %s253
    %p262 = scmp.eq.s32.totalorder %s27, 0
    %p263 = por %p261, %p262
    %p264 = scmp.ne.s32.totalorder %s252, %s253
    %p265 = scmp.eq.s32.totalorder %s28, 1
    %p266 = por %p264, %p265
    %p268 = scmp.ne.s32.totalorder %s253, %s267
    %p269 = scmp.eq.s32.totalorder %s28, 0
    %p270 = por %p268, %p269
    %s272 = sadd.s32 %s271, 1
    %p275 = scmp.eq.s32.totalorder %s22, 1
    %p276 = scmp.ne.s32.totalorder %s271, %s273
    %p277 = scmp.eq.s32.totalorder %s22, 0
    %p278 = por %p276, %p277
    %p279 = scmp.ne.s32.totalorder %s271, %s273
    %p280 = scmp.eq.s32.totalorder %s27, 1
    %p281 = por %p279, %p280
    %p282 = scmp.ne.s32.totalorder %s273, %s274
    %p283 = scmp.eq.s32.totalorder %s27, 0
    %p284 = por %p282, %p283
    %p285 = scmp.ne.s32.totalorder %s273, %s274
    %p286 = scmp.eq.s32.totalorder %s28, 1
    %p287 = por %p285, %p286
    %p289 = scmp.ne.s32.totalorder %s274, %s288
    %p290 = scmp.eq.s32.totalorder %s28, 0
    %p291 = por %p289, %p290
    %s293 = sadd.s32 %s292, 1
    %p296 = scmp.eq.s32.totalorder %s22, 1
    %p297 = scmp.ne.s32.totalorder %s292, %s294
    %p298 = scmp.eq.s32.totalorder %s22, 0
    %p299 = por %p297, %p298
    %p300 = scmp.ne.s32.totalorder %s292, %s294
    %p301 = scmp.eq.s32.totalorder %s27, 1
    %p302 = por %p300, %p301
    %p303 = scmp.ne.s32.totalorder %s294, %s295
    %p304 = scmp.eq.s32.totalorder %s27, 0
    %p305 = por %p303, %p304
    %p306 = scmp.ne.s32.totalorder %s294, %s295
    %p307 = scmp.eq.s32.totalorder %s28, 1
    %p308 = por %p306, %p307
    %p310 = scmp.ne.s32.totalorder %s295, %s309
    %p311 = scmp.eq.s32.totalorder %s28, 0
    %p312 = por %p310, %p311
    %s314 = sadd.s32 %s313, 1
    %p317 = scmp.eq.s32.totalorder %s22, 1
    %p318 = scmp.ne.s32.totalorder %s313, %s315
    %p319 = scmp.eq.s32.totalorder %s22, 0
    %p320 = por %p318, %p319
    %p321 = scmp.ne.s32.totalorder %s313, %s315
    %p322 = scmp.eq.s32.totalorder %s27, 1
    %p323 = por %p321, %p322
    %p324 = scmp.ne.s32.totalorder %s315, %s316
    %p325 = scmp.eq.s32.totalorder %s27, 0
    %p326 = por %p324, %p325
    %p327 = scmp.ne.s32.totalorder %s315, %s316
    %p328 = scmp.eq.s32.totalorder %s28, 1
    %p329 = por %p327, %p328
    %p331 = scmp.ne.s32.totalorder %s316, %s330
    %p332 = scmp.eq.s32.totalorder %s28, 0
    %p333 = por %p331, %p332
    %s335 = sadd.s32 %s334, 1
    %p338 = scmp.eq.s32.totalorder %s22, 1
    %p339 = scmp.ne.s32.totalorder %s334, %s336
    %p340 = scmp.eq.s32.totalorder %s22, 0
    %p341 = por %p339, %p340
    %p342 = scmp.ne.s32.totalorder %s334, %s336
    %p343 = scmp.eq.s32.totalorder %s27, 1
    %p344 = por %p342, %p343
    %p345 = scmp.ne.s32.totalorder %s336, %s337
    %p346 = scmp.eq.s32.totalorder %s27, 0
    %p347 = por %p345, %p346
    %p348 = scmp.ne.s32.totalorder %s336, %s337
    %p349 = scmp.eq.s32.totalorder %s28, 1
    %p350 = por %p348, %p349
    %p352 = scmp.ne.s32.totalorder %s337, %s351
    %p353 = scmp.eq.s32.totalorder %s28, 0
    %p354 = por %p352, %p353
    %s356 = sadd.s32 %s355, 1
    %p359 = scmp.eq.s32.totalorder %s22, 1
    %p360 = scmp.ne.s32.totalorder %s355, %s357
    %p361 = scmp.eq.s32.totalorder %s22, 0
    %p362 = por %p360, %p361
    %p363 = scmp.ne.s32.totalorder %s355, %s357
    %p364 = scmp.eq.s32.totalorder %s27, 1
    %p365 = por %p363, %p364
    %p366 = scmp.ne.s32.totalorder %s357, %s358
    %p367 = scmp.eq.s32.totalorder %s27, 0
    %p368 = por %p366, %p367
    %p369 = scmp.ne.s32.totalorder %s357, %s358
    %p370 = scmp.eq.s32.totalorder %s28, 1
    %p371 = por %p369, %p370
    %p373 = scmp.ne.s32.totalorder %s358, %s372
    %p374 = scmp.eq.s32.totalorder %s28, 0
    %p375 = por %p373, %p374
    %s376 = ssub.s32 %s22, %s29
    %p377 = scmp.eq.s32.totalorder %s376, 0
    %s379 = sadd.s32 %s378, 1
    %s380 = scalar_select %p377, %s378, %s379
    %p383 = pneg %p377
    %p384 = scmp.eq.s32.totalorder %s22, 1
    %p385 = por %p383, %p384
    %p386 = scmp.ne.s32.totalorder %s378, %s381
    %p387 = scmp.eq.s32.totalorder %s22, 0
    %p388 = por %p386, %p387
    %p389 = scmp.ne.s32.totalorder %s378, %s381
    %p390 = scmp.eq.s32.totalorder %s27, 1
    %p391 = por %p389, %p390
    %p392 = scmp.ne.s32.totalorder %s381, %s382
    %p393 = scmp.eq.s32.totalorder %s27, 0
    %p394 = por %p392, %p393
    %p395 = scmp.ne.s32.totalorder %s381, %s382
    %p396 = scmp.eq.s32.totalorder %s28, 1
    %p397 = por %p395, %p396
    %p399 = scmp.ne.s32.totalorder %s382, %s398
    %p400 = scmp.eq.s32.totalorder %s28, 0
    %p401 = por %p399, %p400
    %p402 = scmp.le.s32.totalorder 1, %s22
    %p403 = scmp.lt.s32.totalorder %s22, 3
    %p404 = pnand %p402, %p403
    %p405 = pneg %p404
    // Predicated region
    $region9: #{bert_classifier_forward.2} parent=5 // pred_check
      _
    $region10: #{bert_classifier_forward.2} parent=5 // pred_check_branch
      %407 = sbr.rel (%p404) target = $region12
    $region11: #{bert_classifier_forward.2} parent=5 // pred_region
      %s408 = ssub.s32 %s22, 1
      // Predicated region
      $region13: #{bert_classifier_forward.2} parent=11 // pred_check
        %p409 = pneg %p95
      $region14: #{bert_classifier_forward.2} parent=11 // pred_check_branch
        %411 = sbr.rel (%p409) target = $region16
      $region15: #{bert_classifier_forward.2} parent=11 // pred_region
        _
      $region16: #{bert_classifier_forward.2} parent=11 // pred_fallthru
        _
      // Predicated region
      $region17: #{bert_classifier_forward.2} parent=11 // pred_check
        %p412 = pneg %p116
      $region18: #{bert_classifier_forward.2} parent=11 // pred_check_branch
        %414 = sbr.rel (%p412) target = $region20
      $region19: #{bert_classifier_forward.2} parent=11 // pred_region
        _
      $region20: #{bert_classifier_forward.2} parent=11 // pred_fallthru
        _
      // Predicated region
      $region21: #{bert_classifier_forward.2} parent=11 // pred_check
        %p415 = pneg %p137
      $region22: #{bert_classifier_forward.2} parent=11 // pred_check_branch
        %417 = sbr.rel (%p415) target = $region24
      $region23: #{bert_classifier_forward.2} parent=11 // pred_region
        _
      $region24: #{bert_classifier_forward.2} parent=11 // pred_fallthru
        _
      // Predicated region
      $region25: #{bert_classifier_forward.2} parent=11 // pred_check
        %p418 = pneg %p158
      $region26: #{bert_classifier_forward.2} parent=11 // pred_check_branch
        %420 = sbr.rel (%p418) target = $region28
      $region27: #{bert_classifier_forward.2} parent=11 // pred_region
        _
      $region28: #{bert_classifier_forward.2} parent=11 // pred_fallthru
        _
      // Predicated region
      $region29: #{bert_classifier_forward.2} parent=11 // pred_check
        %p421 = pneg %p179
      $region30: #{bert_classifier_forward.2} parent=11 // pred_check_branch
        %423 = sbr.rel (%p421) target = $region32
      $region31: #{bert_classifier_forward.2} parent=11 // pred_region
        _
      $region32: #{bert_classifier_forward.2} parent=11 // pred_fallthru
        _
      // Predicated region
      $region33: #{bert_classifier_forward.2} parent=11 // pred_check
        %p424 = pneg %p200
      $region34: #{bert_classifier_forward.2} parent=11 // pred_check_branch
        %426 = sbr.rel (%p424) target = $region36
      $region35: #{bert_classifier_forward.2} parent=11 // pred_region
        _
      $region36: #{bert_classifier_forward.2} parent=11 // pred_fallthru
        _
      // Predicated region
      $region37: #{bert_classifier_forward.2} parent=11 // pred_check
        %p427 = pneg %p221
      $region38: #{bert_classifier_forward.2} parent=11 // pred_check_branch
        %429 = sbr.rel (%p427) target = $region40
      $region39: #{bert_classifier_forward.2} parent=11 // pred_region
        _
      $region40: #{bert_classifier_forward.2} parent=11 // pred_fallthru
        _
      // Predicated region
      $region41: #{bert_classifier_forward.2} parent=11 // pred_check
        %p430 = pneg %p242
      $region42: #{bert_classifier_forward.2} parent=11 // pred_check_branch
        %432 = sbr.rel (%p430) target = $region44
      $region43: #{bert_classifier_forward.2} parent=11 // pred_region
        _
      $region44: #{bert_classifier_forward.2} parent=11 // pred_fallthru
        _
      // Predicated region
      $region45: #{bert_classifier_forward.2} parent=11 // pred_check
        %p433 = pneg %p263
      $region46: #{bert_classifier_forward.2} parent=11 // pred_check_branch
        %435 = sbr.rel (%p433) target = $region48
      $region47: #{bert_classifier_forward.2} parent=11 // pred_region
        _
      $region48: #{bert_classifier_forward.2} parent=11 // pred_fallthru
        _
      // Predicated region
      $region49: #{bert_classifier_forward.2} parent=11 // pred_check
        %p436 = pneg %p284
      $region50: #{bert_classifier_forward.2} parent=11 // pred_check_branch
        %438 = sbr.rel (%p436) target = $region52
      $region51: #{bert_classifier_forward.2} parent=11 // pred_region
        _
      $region52: #{bert_classifier_forward.2} parent=11 // pred_fallthru
        _
      // Predicated region
      $region53: #{bert_classifier_forward.2} parent=11 // pred_check
        %p439 = pneg %p305
      $region54: #{bert_classifier_forward.2} parent=11 // pred_check_branch
        %441 = sbr.rel (%p439) target = $region56
      $region55: #{bert_classifier_forward.2} parent=11 // pred_region
        _
      $region56: #{bert_classifier_forward.2} parent=11 // pred_fallthru
        _
      // Predicated region
      $region57: #{bert_classifier_forward.2} parent=11 // pred_check
        %p442 = pneg %p326
      $region58: #{bert_classifier_forward.2} parent=11 // pred_check_branch
        %444 = sbr.rel (%p442) target = $region60
      $region59: #{bert_classifier_forward.2} parent=11 // pred_region
        _
      $region60: #{bert_classifier_forward.2} parent=11 // pred_fallthru
        _
      // Predicated region
      $region61: #{bert_classifier_forward.2} parent=11 // pred_check
        %p445 = pneg %p347
      $region62: #{bert_classifier_forward.2} parent=11 // pred_check_branch
        %447 = sbr.rel (%p445) target = $region64
      $region63: #{bert_classifier_forward.2} parent=11 // pred_region
        _
      $region64: #{bert_classifier_forward.2} parent=11 // pred_fallthru
        _
      // Predicated region
      $region65: #{bert_classifier_forward.2} parent=11 // pred_check
        %p448 = pneg %p368
      $region66: #{bert_classifier_forward.2} parent=11 // pred_check_branch
        %450 = sbr.rel (%p448) target = $region68
      $region67: #{bert_classifier_forward.2} parent=11 // pred_region
        _
      $region68: #{bert_classifier_forward.2} parent=11 // pred_fallthru
        _
    $region12: #{bert_classifier_forward.2} parent=5 // pred_fallthru
      _
    %p451 = scmp.lt.s32.totalorder %s22, 2
    // Predicated region
    $region69: #{bert_classifier_forward.2} parent=5 // pred_check
      %p452 = pneg %p451
    $region70: #{bert_classifier_forward.2} parent=5 // pred_check_branch
      %454 = sbr.rel (%p452) target = $region72
    $region71: #{bert_classifier_forward.2} parent=5 // pred_region
      // Predicated region
      $region73: #{bert_classifier_forward.2} parent=71 // pred_check
        %p455 = pneg %p42
      $region74: #{bert_classifier_forward.2} parent=71 // pred_check_branch
        %457 = sbr.rel (%p455) target = $region76
      $region75: #{bert_classifier_forward.2} parent=71 // pred_region
        %p458 = scmp.lt.s32.totalorder %s22, 1
        %s459 = scalar_select %p458, %s22, 1
        %s460 = smul.addr %s459, 8
        %s461 = scalar_lea.vmem %s0, %s460
      $region76: #{bert_classifier_forward.2} parent=71 // pred_fallthru
        _
      // Predicated region
      $region77: #{bert_classifier_forward.2} parent=71 // pred_check
        %p462 = pneg %p68
      $region78: #{bert_classifier_forward.2} parent=71 // pred_check_branch
        %464 = sbr.rel (%p462) target = $region80
      $region79: #{bert_classifier_forward.2} parent=71 // pred_region
        %p465 = scmp.lt.s32.totalorder %s22, 1
        %s466 = scalar_select %p465, %s22, 1
        %s467 = scalar_lea.vmem %s1, %s466
      $region80: #{bert_classifier_forward.2} parent=71 // pred_fallthru
        _
    $region72: #{bert_classifier_forward.2} parent=5 // pred_fallthru
      _
    %p468 = scmp.le.s32.totalorder 1, %s22
    %p469 = scmp.lt.s32.totalorder %s22, 3
    %p470 = pnand %p468, %p469
    %p471 = pneg %p470
    // Predicated region
    $region81: #{bert_classifier_forward.2} parent=5 // pred_check
      _
    $region82: #{bert_classifier_forward.2} parent=5 // pred_check_branch
      %473 = sbr.rel (%p470) target = $region84
    $region83: #{bert_classifier_forward.2} parent=5 // pred_region
      %s474 = ssub.s32 %s22, 1
      %p475 = scmp.lt.s32.totalorder %s27, 1
      %s476 = scalar_select %p475, %s27, 1
      %s477 = smul.addr %s476, 8
      %s478 = scalar_lea.vmem %s0, %s477
      %p479 = pneg %p48
      %p480 = pneg %p45
      %p481 = scmp.lt.s32.totalorder %s27, 1
      %s482 = scalar_select %p481, %s27, 1
      %s483 = scalar_lea.vmem %s1, %s482
      %p484 = pneg %p74
      %p485 = pneg %p71
      %p486 = pneg %p95
      %p487 = pneg %p92
      %p488 = pneg %p116
      %p489 = pneg %p113
      %p490 = pneg %p137
      %p491 = pneg %p134
      %p492 = pneg %p158
      %p493 = pneg %p155
      %p494 = pneg %p179
      %p495 = pneg %p176
      %p496 = pneg %p200
      %p497 = pneg %p197
      %p498 = pneg %p221
      %p499 = pneg %p218
      %p500 = pneg %p242
      %p501 = pneg %p239
      %p502 = pneg %p263
      %p503 = pneg %p260
      %p504 = pneg %p284
      %p505 = pneg %p281
      %p506 = pneg %p305
      %p507 = pneg %p302
      %p508 = pneg %p326
      %p509 = pneg %p323
      %p510 = pneg %p347
      %p511 = pneg %p344
      %p512 = pneg %p368
      %p513 = pneg %p365
      %p514 = pneg %p394
      %p515 = pneg %p391
      %p516 = scmp.lt.s32.totalorder %s27, 1
      %s517 = scalar_select %p516, %s27, 1
      %s518 = smul.addr %s517, 8
      %s519 = scalar_lea.vmem %s16, %s518
      %p520 = scmp.lt.s32.totalorder %s27, 1
      %s521 = scalar_select %p520, %s27, 1
      %s522 = smul.addr %s521, 8
      %s523 = scalar_lea.vmem %s0, %s522
      %p524 = scmp.lt.s32.totalorder %s27, 1
      %s525 = scalar_select %p524, %s27, 1
      %s526 = scalar_lea.vmem %s1, %s525
      %p527 = scmp.lt.s32.totalorder %s27, 1
      %s528 = scalar_select %p527, %s27, 1
      %s529 = smul.addr %s528, 8
      %s530 = scalar_lea.vmem %s16, %s529
      %v532 = vld [vmem:[%s523] sm:$0xff]
      %v533 = vld [vmem:[%s2] sm:$0x1]
      %v534 = vld [vmem:[%s3] sm:$0x1]
      %vm535 = vcmask 261120
      %v536 = vsel %vm535, %v532, 0.0
      %537 = vadd.xlane.f32.xlu0 %v536
      %v538 = vpop.xlane.xlu0 %537
      %v539 = vrcp.pop 32.0
      %v540 = vmul.f32 %v538, %v539
      %v541 = vsub.f32 %v532, %v540
      %v542 = vmul.f32 %v541, %v541
      %v543 = vsel %vm535, %v542, 0.0
      %544 = vadd.xlane.f32.xlu0 %v543
      %v545 = vpop.xlane.xlu0 %544
      %v546 = vmul.f32 %v545, %v539
      %v547 = vadd.f32 %v546, 1e-12
      %v548 = vrsqrt.pop %v547
      %v549 = vmul.f32 %v541, %v548
      %v551 = vlaneseq
      %v552 = vshrl.u32 %v551, 7
      %v553 = vsub.s32 0, %v552
      %v554 = vrot.slane %v533, %v553
      %v556 = vmul.f32 %v549, %v554
      %v558 = vlaneseq
      %v559 = vshrl.u32 %v558, 7
      %v560 = vsub.s32 0, %v559
      %v561 = vrot.slane %v534, %v560
      %v563 = vadd.f32 %v556, %v561
      %v564 = vld [vmem:[%s526] sm:$0x1]
      %v565 = vsub.f32 1.0, %v564
      %v566 = vmul.f32 %v565, -10000.0
      %v567 = vld [vmem:[%s4] sm:$0xff]
      %v568 = vld [vmem:[%s4 + $0x8] sm:$0xff]
      %v569 = vld [vmem:[%s4 + $0x10] sm:$0xff]
      %v570 = vld [vmem:[%s4 + $0x18] sm:$0xff]
      %v571 = vpack.c.bf16 %v563, %v563
      %v572 = vpack.c.bf16 %v568, %v567
      %v573 = vpack.c.bf16 %v570, %v569
      %v574 = vld [vmem:[%s5] sm:$0x1]
      %v576 = vlaneseq
      %v577 = vshrl.u32 %v576, 7
      %v578 = vsub.s32 0, %v577
      %v579 = vrot.slane %v574, %v578
      %v582 = vsel %vm535, %v571, 0
      %584 = vmatprep.subr.bf16.mxu0 0
      %585 = vmatpush1.bf16.msra.mxu0 %v572
      %586 = vmatprep.subr.bf16.mxu0 0
      %587 = vmatpush1.bf16.msra.mxu0 %v573
      %588 = vmatprep.subr.bf16.mxu0 0
      %589 = vmatpush1.bf16.msra.mxu0 0
      %590 = vmatprep.subr.bf16.mxu0 0
      %591 = vmatpush1.bf16.msra.mxu0 0
      %592 = vmatprep.subr.bf16.mxu0 0
      %593 = vmatpush1.bf16.msra.mxu0 0
      %594 = vmatprep.subr.bf16.mxu0 0
      %595 = vmatpush1.bf16.msra.mxu0 0
      %596 = vmatprep.subr.bf16.mxu0 0
      %597 = vmatpush1.bf16.msra.mxu0 0
      %598 = vmatprep.subr.bf16.mxu0 0
      %599 = vmatpush1.bf16.msra.mxu0 0
      %600 = vmatprep.subr.bf16.mxu0 0
      %601 = vmatpush1.bf16.msra.mxu0 0
      %602 = vmatprep.subr.bf16.mxu0 0
      %603 = vmatpush1.bf16.msra.mxu0 0
      %604 = vmatprep.subr.bf16.mxu0 0
      %605 = vmatpush1.bf16.msra.mxu0 0
      %606 = vmatprep.subr.bf16.mxu0 0
      %607 = vmatpush1.bf16.msra.mxu0 0
      %608 = vmatprep.subr.bf16.mxu0 0
      %609 = vmatpush1.bf16.msra.mxu0 0
      %610 = vmatprep.subr.bf16.mxu0 0
      %611 = vmatpush1.bf16.msra.mxu0 0
      %612 = vmatprep.subr.bf16.mxu0 0
      %613 = vmatpush1.bf16.msra.mxu0 0
      %614 = vmatprep.subr.bf16.mxu0 0
      %615 = vmatpush1.bf16.msra.mxu0 0
      %616 = vmatprep.mubr.bf16.mxu0 0
      %617 = vmatmul.mubr.bf16.gmra.mrb[0].mxu0 %v582
      %v618 = vpop.f32.mrb[0].mxu0
      %v619 = vadd.f32 %v579, %v618
      %v620 = vpop.f32.mrb[0].mxu0
      %v621 = vpop.f32.mrb[0].mxu0
      %v622 = vpop.f32.mrb[0].mxu0
      %623 = vdwg.mxu0
      %625 = vrot.lane.b32.xlu0 %v619, 96
      %v626 = vpop.permute.xlu0 %625
      %628 = vxpose.xlu0.b32.start [1/16] %v626, 128
      %629 = vxpose.xlu0.b32.cont [2/16] 0.0, 128
      %630 = vxpose.xlu0.b32.cont [3/16] 0.0, 128
      %631 = vxpose.xlu0.b32.cont [4/16] 0.0, 128
      %632 = vxpose.xlu0.b32.cont [5/16] 0.0, 128
      %633 = vxpose.xlu0.b32.cont [6/16] 0.0, 128
      %634 = vxpose.xlu0.b32.cont [7/16] 0.0, 128
      %635 = vxpose.xlu0.b32.cont [8/16] 0.0, 128
      %636 = vxpose.xlu0.b32.cont [9/16] 0.0, 128
      %637 = vxpose.xlu0.b32.cont [10/16] 0.0, 128
      %638 = vxpose.xlu0.b32.cont [11/16] 0.0, 128
      %639 = vxpose.xlu0.b32.cont [12/16] 0.0, 128
      %640 = vxpose.xlu0.b32.cont [13/16] 0.0, 128
      %641 = vxpose.xlu0.b32.cont [14/16] 0.0, 128
      %642 = vxpose.xlu0.b32.cont [15/16] 0.0, 128
      %643 = vxpose.xlu0.b32.end [16/16] 0.0, 128
      %v644 = vpop.trf.xlu0
      %v645 = vpop.trf.xlu0
      %v646 = vpop.trf.xlu0
      %v647 = vpop.trf.xlu0
      %v648 = vpop.trf.xlu0
      %v649 = vpop.trf.xlu0
      %v650 = vpop.trf.xlu0
      %v651 = vpop.trf.xlu0
      %v652 = vpop.trf.xlu0
      %v653 = vpop.trf.xlu0
      %v654 = vpop.trf.xlu0
      %v655 = vpop.trf.xlu0
      %v656 = vpop.trf.xlu0
      %v657 = vpop.trf.xlu0
      %v658 = vpop.trf.xlu0
      %v659 = vpop.trf.xlu0
      %v660 = vpack.c.bf16 %v619, %v619
      %v661 = vpack.c.bf16 %v645, %v644
      %vm662 = vcmask 130048
      %v664 = vsel %vm662, %v660, 0
      %666 = vmatprep.subr.bf16.mxu0 0
      %667 = vmatpush1.bf16.msra.mxu0 %v661
      %668 = vmatprep.subr.bf16.mxu0 0
      %669 = vmatpush1.bf16.msra.mxu0 0
      %670 = vmatprep.subr.bf16.mxu0 0
      %671 = vmatpush1.bf16.msra.mxu0 0
      %672 = vmatprep.subr.bf16.mxu0 0
      %673 = vmatpush1.bf16.msra.mxu0 0
      %674 = vmatprep.subr.bf16.mxu0 0
      %675 = vmatpush1.bf16.msra.mxu0 0
      %676 = vmatprep.subr.bf16.mxu0 0
      %677 = vmatpush1.bf16.msra.mxu0 0
      %678 = vmatprep.subr.bf16.mxu0 0
      %679 = vmatpush1.bf16.msra.mxu0 0
      %680 = vmatprep.subr.bf16.mxu0 0
      %681 = vmatpush1.bf16.msra.mxu0 0
      %682 = vmatprep.subr.bf16.mxu0 0
      %683 = vmatpush1.bf16.msra.mxu0 0
      %684 = vmatprep.subr.bf16.mxu0 0
      %685 = vmatpush1.bf16.msra.mxu0 0
      %686 = vmatprep.subr.bf16.mxu0 0
      %687 = vmatpush1.bf16.msra.mxu0 0
      %688 = vmatprep.subr.bf16.mxu0 0
      %689 = vmatpush1.bf16.msra.mxu0 0
      %690 = vmatprep.subr.bf16.mxu0 0
      %691 = vmatpush1.bf16.msra.mxu0 0
      %692 = vmatprep.subr.bf16.mxu0 0
      %693 = vmatpush1.bf16.msra.mxu0 0
      %694 = vmatprep.subr.bf16.mxu0 0
      %695 = vmatpush1.bf16.msra.mxu0 0
      %696 = vmatprep.subr.bf16.mxu0 0
      %697 = vmatpush1.bf16.msra.mxu0 0
      %698 = vmatprep.mubr.bf16.mxu0 0
      %699 = vmatmul.mubr.bf16.gmra.mrb[0].mxu0 %v664
      %v700 = vpop.f32.mrb[0].mxu0
      %v701 = vadd.f32 0.0, %v700
      %v702 = vpop.f32.mrb[0].mxu0
      %v703 = vpop.f32.mrb[0].mxu0
      %v704 = vpop.f32.mrb[0].mxu0
      %705 = vdwg.mxu0
      %v706 = vmul.f32 %v701, 0.25
      %v708 = vlaneseq
      %v709 = vshrl.u32 %v708, 7
      %v710 = vsub.s32 0, %v709
      %v711 = vrot.slane %v566, %v710
      %v713 = vadd.f32 %v706, %v711
      %vm714 = vcmask 64512
      %v715 = vsel %vm714, %v713, -inf
      %716 = vmax.xlane.f32.xlu0 %v715
      %v717 = vpop.xlane.xlu0 %716
      %v718 = vsub.f32 %v713, %v717
      %v719 = vmul.f32 %v718, 1.442695
      %v720 = vpow.pop %v719
      %v721 = vsel %vm714, %v720, 0.0
      %722 = vadd.xlane.f32.xlu0 %v721
      %v723 = vpop.xlane.xlu0 %722
      %v724 = vrcp.pop %v723
      %v725 = vmul.f32 %v720, %v724
      %v726 = vpack.c.bf16 %v725, %v725
      %728 = vrot.lane.b32.xlu0 %v660, 64
      %v729 = vpop.permute.xlu0 %728
      %v731 = vsel %vm714, %v726, 0
      %vm733 = vcmask 1043456
      %v735 = vsel %vm733, %v729, 0
      %737 = vmatprep.subr.bf16.mxu0 0
      %738 = vmatpush1.bf16.msra.mxu0 %v735
      %739 = vmatprep.subr.bf16.mxu0 0
      %740 = vmatpush1.bf16.msra.mxu0 0
      %741 = vmatprep.subr.bf16.mxu0 0
      %742 = vmatpush1.bf16.msra.mxu0 0
      %743 = vmatprep.subr.bf16.mxu0 0
      %744 = vmatpush1.bf16.msra.mxu0 0
      %745 = vmatprep.subr.bf16.mxu0 0
      %746 = vmatpush1.bf16.msra.mxu0 0
      %747 = vmatprep.subr.bf16.mxu0 0
      %748 = vmatpush1.bf16.msra.mxu0 0
      %749 = vmatprep.subr.bf16.mxu0 0
      %750 = vmatpush1.bf16.msra.mxu0 0
      %751 = vmatprep.subr.bf16.mxu0 0
      %752 = vmatpush1.bf16.msra.mxu0 0
      %753 = vmatprep.subr.bf16.mxu0 0
      %754 = vmatpush1.bf16.msra.mxu0 0
      %755 = vmatprep.subr.bf16.mxu0 0
      %756 = vmatpush1.bf16.msra.mxu0 0
      %757 = vmatprep.subr.bf16.mxu0 0
      %758 = vmatpush1.bf16.msra.mxu0 0
      %759 = vmatprep.subr.bf16.mxu0 0
      %760 = vmatpush1.bf16.msra.mxu0 0
      %761 = vmatprep.subr.bf16.mxu0 0
      %762 = vmatpush1.bf16.msra.mxu0 0
      %763 = vmatprep.subr.bf16.mxu0 0
      %764 = vmatpush1.bf16.msra.mxu0 0
      %765 = vmatprep.subr.bf16.mxu0 0
      %766 = vmatpush1.bf16.msra.mxu0 0
      %767 = vmatprep.subr.bf16.mxu0 0
      %768 = vmatpush1.bf16.msra.mxu0 0
      %769 = vmatprep.mubr.bf16.mxu0 0
      %770 = vmatmul.mubr.bf16.gmra.mrb[0].mxu0 %v731
      %v771 = vpop.f32.mrb[0].mxu0
      %v772 = vadd.f32 0.0, %v771
      %v773 = vpop.f32.mrb[0].mxu0
      %v774 = vpop.f32.mrb[0].mxu0
      %v775 = vpop.f32.mrb[0].mxu0
      %776 = vdwg.mxu0
      %777 = vrot.lane.b32.xlu0 %v619, 80
      %v778 = vpop.permute.xlu0 %777
      %780 = vxpose.xlu0.b32.start [1/16] %v778, 128
      %781 = vxpose.xlu0.b32.cont [2/16] 0.0, 128
      %782 = vxpose.xlu0.b32.cont [3/16] 0.0, 128
      %783 = vxpose.xlu0.b32.cont [4/16] 0.0, 128
      %784 = vxpose.xlu0.b32.cont [5/16] 0.0, 128
      %785 = vxpose.xlu0.b32.cont [6/16] 0.0, 128
      %786 = vxpose.xlu0.b32.cont [7/16] 0.0, 128
      %787 = vxpose.xlu0.b32.cont [8/16] 0.0, 128
      %788 = vxpose.xlu0.b32.cont [9/16] 0.0, 128
      %789 = vxpose.xlu0.b32.cont [10/16] 0.0, 128
      %790 = vxpose.xlu0.b32.cont [11/16] 0.0, 128
      %791 = vxpose.xlu0.b32.cont [12/16] 0.0, 128
      %792 = vxpose.xlu0.b32.cont [13/16] 0.0, 128
      %793 = vxpose.xlu0.b32.cont [14/16] 0.0, 128
      %794 = vxpose.xlu0.b32.cont [15/16] 0.0, 128
      %795 = vxpose.xlu0.b32.end [16/16] 0.0, 128
      %v796 = vpop.trf.xlu0
      %v797 = vpop.trf.xlu0
      %v798 = vpop.trf.xlu0
      %v799 = vpop.trf.xlu0
      %v800 = vpop.trf.xlu0
      %v801 = vpop.trf.xlu0
      %v802 = vpop.trf.xlu0
      %v803 = vpop.trf.xlu0
      %v804 = vpop.trf.xlu0
      %v805 = vpop.trf.xlu0
      %v806 = vpop.trf.xlu0
      %v807 = vpop.trf.xlu0
      %v808 = vpop.trf.xlu0
      %v809 = vpop.trf.xlu0
      %v810 = vpop.trf.xlu0
      %v811 = vpop.trf.xlu0
      %v812 = vpack.c.bf16 %v797, %v796
      %813 = vrot.lane.b32.xlu0 %v660, 112
      %v814 = vpop.permute.xlu0 %813
      %v816 = vsel %vm662, %v814, 0
      %818 = vmatprep.subr.bf16.mxu0 0
      %819 = vmatpush1.bf16.msra.mxu0 %v812
      %820 = vmatprep.subr.bf16.mxu0 0
      %821 = vmatpush1.bf16.msra.mxu0 0
      %822 = vmatprep.subr.bf16.mxu0 0
      %823 = vmatpush1.bf16.msra.mxu0 0
      %824 = vmatprep.subr.bf16.mxu0 0
      %825 = vmatpush1.bf16.msra.mxu0 0
      %826 = vmatprep.subr.bf16.mxu0 0
      %827 = vmatpush1.bf16.msra.mxu0 0
      %828 = vmatprep.subr.bf16.mxu0 0
      %829 = vmatpush1.bf16.msra.mxu0 0
      %830 = vmatprep.subr.bf16.mxu0 0
      %831 = vmatpush1.bf16.msra.mxu0 0
      %832 = vmatprep.subr.bf16.mxu0 0
      %833 = vmatpush1.bf16.msra.mxu0 0
      %834 = vmatprep.subr.bf16.mxu0 0
      %835 = vmatpush1.bf16.msra.mxu0 0
      %836 = vmatprep.subr.bf16.mxu0 0
      %837 = vmatpush1.bf16.msra.mxu0 0
      %838 = vmatprep.subr.bf16.mxu0 0
      %839 = vmatpush1.bf16.msra.mxu0 0
      %840 = vmatprep.subr.bf16.mxu0 0
      %841 = vmatpush1.bf16.msra.mxu0 0
      %842 = vmatprep.subr.bf16.mxu0 0
      %843 = vmatpush1.bf16.msra.mxu0 0
      %844 = vmatprep.subr.bf16.mxu0 0
      %845 = vmatpush1.bf16.msra.mxu0 0
      %846 = vmatprep.subr.bf16.mxu0 0
      %847 = vmatpush1.bf16.msra.mxu0 0
      %848 = vmatprep.subr.bf16.mxu0 0
      %849 = vmatpush1.bf16.msra.mxu0 0
      %850 = vmatprep.mubr.bf16.mxu0 0
      %851 = vmatmul.mubr.bf16.gmra.mrb[0].mxu0 %v816
      %v852 = vpop.f32.mrb[0].mxu0
      %v853 = vadd.f32 0.0, %v852
      %v854 = vpop.f32.mrb[0].mxu0
      %v855 = vpop.f32.mrb[0].mxu0
      %v856 = vpop.f32.mrb[0].mxu0
      %857 = vdwg.mxu0
      %v858 = vmul.f32 %v853, 0.25
      %v859 = vadd.f32 %v858, %v711
      %v860 = vsel %vm714, %v859, -inf
      %861 = vmax.xlane.f32.xlu0 %v860
      %v862 = vpop.xlane.xlu0 %861
      %v863 = vsub.f32 %v859, %v862
      %v864 = vmul.f32 %v863, 1.442695
      %v865 = vpow.pop %v864
      %v866 = vsel %vm714, %v865, 0.0
      %867 = vadd.xlane.f32.xlu0 %v866
      %v868 = vpop.xlane.xlu0 %867
      %v869 = vrcp.pop %v868
      %v870 = vmul.f32 %v865, %v869
      %v871 = vpack.c.bf16 %v870, %v870
      %872 = vrot.lane.b32.xlu0 %v660, 48
      %v873 = vpop.permute.xlu0 %872
      %v875 = vsel %vm714, %v871, 0
      %v878 = vsel %vm733, %v873, 0
      %880 = vmatprep.subr.bf16.mxu0 0
      %881 = vmatpush1.bf16.msra.mxu0 %v878
      %882 = vmatprep.subr.bf16.mxu0 0
      %883 = vmatpush1.bf16.msra.mxu0 0
      %884 = vmatprep.subr.bf16.mxu0 0
      %885 = vmatpush1.bf16.msra.mxu0 0
      %886 = vmatprep.subr.bf16.mxu0 0
      %887 = vmatpush1.bf16.msra.mxu0 0
      %888 = vmatprep.subr.bf16.mxu0 0
      %889 = vmatpush1.bf16.msra.mxu0 0
      %890 = vmatprep.subr.bf16.mxu0 0
      %891 = vmatpush1.bf16.msra.mxu0 0
      %892 = vmatprep.subr.bf16.mxu0 0
      %893 = vmatpush1.bf16.msra.mxu0 0
      %894 = vmatprep.subr.bf16.mxu0 0
      %895 = vmatpush1.bf16.msra.mxu0 0
      %896 = vmatprep.subr.bf16.mxu0 0
      %897 = vmatpush1.bf16.msra.mxu0 0
      %898 = vmatprep.subr.bf16.mxu0 0
      %899 = vmatpush1.bf16.msra.mxu0 0
      %900 = vmatprep.subr.bf16.mxu0 0
      %901 = vmatpush1.bf16.msra.mxu0 0
      %902 = vmatprep.subr.bf16.mxu0 0
      %903 = vmatpush1.bf16.msra.mxu0 0
      %904 = vmatprep.subr.bf16.mxu0 0
      %905 = vmatpush1.bf16.msra.mxu0 0
      %906 = vmatprep.subr.bf16.mxu0 0
      %907 = vmatpush1.bf16.msra.mxu0 0
      %908 = vmatprep.subr.bf16.mxu0 0
      %909 = vmatpush1.bf16.msra.mxu0 0
      %910 = vmatprep.subr.bf16.mxu0 0
      %911 = vmatpush1.bf16.msra.mxu0 0
      %912 = vmatprep.mubr.bf16.mxu0 0
      %913 = vmatmul.mubr.bf16.gmra.mrb[0].mxu0 %v875
      %v914 = vpop.f32.mrb[0].mxu0
      %v915 = vadd.f32 0.0, %v914
      %v916 = vpop.f32.mrb[0].mxu0
      %v917 = vpop.f32.mrb[0].mxu0
      %v918 = vpop.f32.mrb[0].mxu0
      %919 = vdwg.mxu0
      %921 = vrot.lane.b32.xlu0 %v915, 16
      %v922 = vpop.permute.xlu0 %921
      %v924 = vsel %vm662, %v772, %v922
      %v925 = vld [vmem:[%s6] sm:$0xff]
      %v926 = vld [vmem:[%s6 + $0x8] sm:$0xff]
      %v927 = vld [vmem:[%s6 + $0x10] sm:$0xff]
      %v928 = vld [vmem:[%s6 + $0x18] sm:$0xff]
      %v929 = vpack.c.bf16 %v924, %v924
      %v930 = vpack.c.bf16 %v926, %v925
      %v931 = vpack.c.bf16 %v928, %v927
      %v932 = vld [vmem:[%s7] sm:$0x1]
      %v934 = vlaneseq
      %v935 = vshrl.u32 %v934, 7
      %v936 = vsub.s32 0, %v935
      %v937 = vrot.slane %v932, %v936
      %v940 = vsel %vm535, %v929, 0
      %942 = vmatprep.subr.bf16.mxu0 0
      %943 = vmatpush1.bf16.msra.mxu0 %v930
      %944 = vmatprep.subr.bf16.mxu0 0
      %945 = vmatpush1.bf16.msra.mxu0 %v931
      %946 = vmatprep.subr.bf16.mxu0 0
      %947 = vmatpush1.bf16.msra.mxu0 0
      %948 = vmatprep.subr.bf16.mxu0 0
      %949 = vmatpush1.bf16.msra.mxu0 0
      %950 = vmatprep.subr.bf16.mxu0 0
      %951 = vmatpush1.bf16.msra.mxu0 0
      %952 = vmatprep.subr.bf16.mxu0 0
      %953 = vmatpush1.bf16.msra.mxu0 0
      %954 = vmatprep.subr.bf16.mxu0 0
      %955 = vmatpush1.bf16.msra.mxu0 0
      %956 = vmatprep.subr.bf16.mxu0 0
      %957 = vmatpush1.bf16.msra.mxu0 0
      %958 = vmatprep.subr.bf16.mxu0 0
      %959 = vmatpush1.bf16.msra.mxu0 0
      %960 = vmatprep.subr.bf16.mxu0 0
      %961 = vmatpush1.bf16.msra.mxu0 0
      %962 = vmatprep.subr.bf16.mxu0 0
      %963 = vmatpush1.bf16.msra.mxu0 0
      %964 = vmatprep.subr.bf16.mxu0 0
      %965 = vmatpush1.bf16.msra.mxu0 0
      %966 = vmatprep.subr.bf16.mxu0 0
      %967 = vmatpush1.bf16.msra.mxu0 0
      %968 = vmatprep.subr.bf16.mxu0 0
      %969 = vmatpush1.bf16.msra.mxu0 0
      %970 = vmatprep.subr.bf16.mxu0 0
      %971 = vmatpush1.bf16.msra.mxu0 0
      %972 = vmatprep.subr.bf16.mxu0 0
      %973 = vmatpush1.bf16.msra.mxu0 0
      %974 = vmatprep.mubr.bf16.mxu0 0
      %975 = vmatmul.mubr.bf16.gmra.mrb[0].mxu0 %v940
      %v976 = vpop.f32.mrb[0].mxu0
      %v977 = vadd.f32 %v937, %v976
      %v978 = vpop.f32.mrb[0].mxu0
      %v979 = vpop.f32.mrb[0].mxu0
      %v980 = vpop.f32.mrb[0].mxu0
      %981 = vdwg.mxu0
      %v982 = vadd.f32 %v563, %v977
      %v983 = vld [vmem:[%s8] sm:$0x1]
      %v984 = vld [vmem:[%s9] sm:$0x1]
      %v985 = vsel %vm535, %v982, 0.0
      %986 = vadd.xlane.f32.xlu0 %v985
      %v987 = vpop.xlane.xlu0 %986
      %v988 = vmul.f32 %v987, %v539
      %v989 = vsub.f32 %v982, %v988
      %v990 = vmul.f32 %v989, %v989
      %v991 = vsel %vm535, %v990, 0.0
      %992 = vadd.xlane.f32.xlu0 %v991
      %v993 = vpop.xlane.xlu0 %992
      %v994 = vmul.f32 %v993, %v539
      %v995 = vadd.f32 %v994, 1e-12
      %v996 = vrsqrt.pop %v995
      %v997 = vmul.f32 %v989, %v996
      %v999 = vlaneseq
      %v1000 = vshrl.u32 %v999, 7
      %v1001 = vsub.s32 0, %v1000
      %v1002 = vrot.slane %v983, %v1001
      %v1004 = vmul.f32 %v997, %v1002
      %v1006 = vlaneseq
      %v1007 = vshrl.u32 %v1006, 7
      %v1008 = vsub.s32 0, %v1007
      %v1009 = vrot.slane %v984, %v1008
      %v1011 = vadd.f32 %v1004, %v1009
      %v1012 = vld [vmem:[%s10] sm:$0xff]
      %v1013 = vld [vmem:[%s10 + $0x8] sm:$0xff]
      %v1014 = vld [vmem:[%s10 + $0x10] sm:$0xff]
      %v1015 = vld [vmem:[%s10 + $0x18] sm:$0xff]
      %v1016 = vpack.c.bf16 %v1011, %v1011
      %v1017 = vpack.c.bf16 %v1013, %v1012
      %v1018 = vpack.c.bf16 %v1015, %v1014
      %v1019 = vld [vmem:[%s11] sm:$0x1]
      %v1021 = vlaneseq
      %v1022 = vshrl.u32 %v1021, 7
      %v1023 = vsub.s32 0, %v1022
      %v1024 = vrot.slane %v1019, %v1023
      %v1027 = vsel %vm535, %v1016, 0
      %1029 = vmatprep.subr.bf16.mxu0 0
      %1030 = vmatpush1.bf16.msra.mxu0 %v1017
      %1031 = vmatprep.subr.bf16.mxu0 0
      %1032 = vmatpush1.bf16.msra.mxu0 %v1018
      %1033 = vmatprep.subr.bf16.mxu0 0
      %1034 = vmatpush1.bf16.msra.mxu0 0
      %1035 = vmatprep.subr.bf16.mxu0 0
      %1036 = vmatpush1.bf16.msra.mxu0 0
      %1037 = vmatprep.subr.bf16.mxu0 0
      %1038 = vmatpush1.bf16.msra.mxu0 0
      %1039 = vmatprep.subr.bf16.mxu0 0
      %1040 = vmatpush1.bf16.msra.mxu0 0
      %1041 = vmatprep.subr.bf16.mxu0 0
      %1042 = vmatpush1.bf16.msra.mxu0 0
      %1043 = vmatprep.subr.bf16.mxu0 0
      %1044 = vmatpush1.bf16.msra.mxu0 0
      %1045 = vmatprep.subr.bf16.mxu0 0
      %1046 = vmatpush1.bf16.msra.mxu0 0
      %1047 = vmatprep.subr.bf16.mxu0 0
      %1048 = vmatpush1.bf16.msra.mxu0 0
      %1049 = vmatprep.subr.bf16.mxu0 0
      %1050 = vmatpush1.bf16.msra.mxu0 0
      %1051 = vmatprep.subr.bf16.mxu0 0
      %1052 = vmatpush1.bf16.msra.mxu0 0
      %1053 = vmatprep.subr.bf16.mxu0 0
      %1054 = vmatpush1.bf16.msra.mxu0 0
      %1055 = vmatprep.subr.bf16.mxu0 0
      %1056 = vmatpush1.bf16.msra.mxu0 0
      %1057 = vmatprep.subr.bf16.mxu0 0
      %1058 = vmatpush1.bf16.msra.mxu0 0
      %1059 = vmatprep.subr.bf16.mxu0 0
      %1060 = vmatpush1.bf16.msra.mxu0 0
      %1061 = vmatprep.mubr.bf16.mxu0 0
      %1062 = vmatmul.mubr.bf16.gmra.mrb[0].mxu0 %v1027
      %v1063 = vpop.f32.mrb[0].mxu0
      %v1064 = vadd.f32 %v1024, %v1063
      %v1065 = vpop.f32.mrb[0].mxu0
      %v1066 = vpop.f32.mrb[0].mxu0
      %v1067 = vpop.f32.mrb[0].mxu0
      %1068 = vdwg.mxu0
      %v1069 = vmul.f32 %v1064, 0.5
      %v1070 = vmul.f32 %v1064, 0.044715
      %v1071 = vmul.f32 %v1070, %v1064
      %v1072 = vmul.f32 %v1071, %v1064
      %v1073 = vadd.f32 %v1064, %v1072
      %v1074 = vmul.f32 %v1073, 0.7978846
      %v1075 = vtanh.pop %v1074
      %v1076 = vadd.f32 %v1075, 1.0
      %v1077 = vmul.f32 %v1069, %v1076
      %v1078 = vld [vmem:[%s12] sm:$0xff]
      %v1079 = vld [vmem:[%s12 + $0x8] sm:$0xff]
      %v1080 = vld [vmem:[%s12 + $0x10] sm:$0xff]
      %v1081 = vld [vmem:[%s12 + $0x18] sm:$0xff]
      %v1082 = vld [vmem:[%s12 + $0x20] sm:$0xff]
      %v1083 = vld [vmem:[%s12 + $0x28] sm:$0xff]
      %v1084 = vld [vmem:[%s12 + $0x30] sm:$0xff]
      %v1085 = vld [vmem:[%s12 + $0x38] sm:$0xff]
      %v1086 = vpack.c.bf16 %v1077, %v1077
      %v1087 = vpack.c.bf16 %v1079, %v1078
      %v1088 = vpack.c.bf16 %v1081, %v1080
      %v1089 = vpack.c.bf16 %v1083, %v1082
      %v1090 = vpack.c.bf16 %v1085, %v1084
      %v1091 = vld [vmem:[%s13] sm:$0x1]
      %v1093 = vlaneseq
      %v1094 = vshrl.u32 %v1093, 7
      %v1095 = vsub.s32 0, %v1094
      %v1096 = vrot.slane %v1091, %v1095
      %vm1098 = vcmask 523264
      %v1100 = vsel %vm1098, %v1086, 0
      %1102 = vmatprep.subr.bf16.mxu0 0
      %1103 = vmatpush1.bf16.msra.mxu0 %v1087
      %1104 = vmatprep.subr.bf16.mxu0 0
      %1105 = vmatpush1.bf16.msra.mxu0 %v1088
      %1106 = vmatprep.subr.bf16.mxu0 0
      %1107 = vmatpush1.bf16.msra.mxu0 %v1089
      %1108 = vmatprep.subr.bf16.mxu0 0
      %1109 = vmatpush1.bf16.msra.mxu0 %v1090
      %1110 = vmatprep.subr.bf16.mxu0 0
      %1111 = vmatpush1.bf16.msra.mxu0 0
      %1112 = vmatprep.subr.bf16.mxu0 0
      %1113 = vmatpush1.bf16.msra.mxu0 0
      %1114 = vmatprep.subr.bf16.mxu0 0
      %1115 = vmatpush1.bf16.msra.mxu0 0
      %1116 = vmatprep.subr.bf16.mxu0 0
      %1117 = vmatpush1.bf16.msra.mxu0 0
      %1118 = vmatprep.subr.bf16.mxu0 0
      %1119 = vmatpush1.bf16.msra.mxu0 0
      %1120 = vmatprep.subr.bf16.mxu0 0
      %1121 = vmatpush1.bf16.msra.mxu0 0
      %1122 = vmatprep.subr.bf16.mxu0 0
      %1123 = vmatpush1.bf16.msra.mxu0 0
      %1124 = vmatprep.subr.bf16.mxu0 0
      %1125 = vmatpush1.bf16.msra.mxu0 0
      %1126 = vmatprep.subr.bf16.mxu0 0
      %1127 = vmatpush1.bf16.msra.mxu0 0
      %1128 = vmatprep.subr.bf16.mxu0 0
      %1129 = vmatpush1.bf16.msra.mxu0 0
      %1130 = vmatprep.subr.bf16.mxu0 0
      %1131 = vmatpush1.bf16.msra.mxu0 0
      %1132 = vmatprep.subr.bf16.mxu0 0
      %1133 = vmatpush1.bf16.msra.mxu0 0
      %1134 = vmatprep.mubr.bf16.mxu0 0
      %1135 = vmatmul.mubr.bf16.gmra.mrb[0].mxu0 %v1100
      %v1136 = vpop.f32.mrb[0].mxu0
      %v1137 = vadd.f32 %v1096, %v1136
      %v1138 = vpop.f32.mrb[0].mxu0
      %v1139 = vpop.f32.mrb[0].mxu0
      %v1140 = vpop.f32.mrb[0].mxu0
      %1141 = vdwg.mxu0
      %v1142 = vadd.f32 %v1011, %v1137
      %v1143 = vld [vmem:[%s14] sm:$0x1]
      %v1144 = vld [vmem:[%s15] sm:$0x1]
      %v1145 = vsel %vm535, %v1142, 0.0
      %1146 = vadd.xlane.f32.xlu0 %v1145
      %v1147 = vpop.xlane.xlu0 %1146
      %v1148 = vmul.f32 %v1147, %v539
      %v1149 = vsub.f32 %v1142, %v1148
      %v1150 = vmul.f32 %v1149, %v1149
      %v1151 = vsel %vm535, %v1150, 0.0
      %1152 = vadd.xlane.f32.xlu0 %v1151
      %v1153 = vpop.xlane.xlu0 %1152
      %v1154 = vmul.f32 %v1153, %v539
      %v1155 = vadd.f32 %v1154, 1e-12
      %v1156 = vrsqrt.pop %v1155
      %v1157 = vmul.f32 %v1149, %v1156
      %v1159 = vlaneseq
      %v1160 = vshrl.u32 %v1159, 7
      %v1161 = vsub.s32 0, %v1160
      %v1162 = vrot.slane %v1143, %v1161
      %v1164 = vmul.f32 %v1157, %v1162
      %v1166 = vlaneseq
      %v1167 = vshrl.u32 %v1166, 7
      %v1168 = vsub.s32 0, %v1167
      %v1169 = vrot.slane %v1144, %v1168
      %v1171 = vadd.f32 %v1164, %v1169
      %s1172 = scalar_lea.vmem %s4, 32
      %v1173 = vld [vmem:[%s1172] sm:$0xff]
      %v1174 = vld [vmem:[%s1172 + $0x8] sm:$0xff]
      %v1175 = vld [vmem:[%s1172 + $0x10] sm:$0xff]
      %v1176 = vld [vmem:[%s1172 + $0x18] sm:$0xff]
      %v1177 = vpack.c.bf16 %v1171, %v1171
      %v1178 = vpack.c.bf16 %v1174, %v1173
      %v1179 = vpack.c.bf16 %v1176, %v1175
      %s1180 = scalar_lea.vmem %s5, 1
      %v1181 = vld [vmem:[%s1180] sm:$0x1]
      %v1183 = vlaneseq
      %v1184 = vshrl.u32 %v1183, 7
      %v1185 = vsub.s32 0, %v1184
      %v1186 = vrot.slane %v1181, %v1185
      %v1189 = vsel %vm535, %v1177, 0
      %1191 = vmatprep.subr.bf16.mxu0 0
      %1192 = vmatpush1.bf16.msra.mxu0 %v1178
      %1193 = vmatprep.subr.bf16.mxu0 0
      %1194 = vmatpush1.bf16.msra.mxu0 %v1179
      %1195 = vmatprep.subr.bf16.mxu0 0
      %1196 = vmatpush1.bf16.msra.mxu0 0
      %1197 = vmatprep.subr.bf16.mxu0 0
      %1198 = vmatpush1.bf16.msra.mxu0 0
      %1199 = vmatprep.subr.bf16.mxu0 0
      %1200 = vmatpush1.bf16.msra.mxu0 0
      %1201 = vmatprep.subr.bf16.mxu0 0
      %1202 = vmatpush1.bf16.msra.mxu0 0
      %1203 = vmatprep.subr.bf16.mxu0 0
      %1204 = vmatpush1.bf16.msra.mxu0 0
      %1205 = vmatprep.subr.bf16.mxu0 0
      %1206 = vmatpush1.bf16.msra.mxu0 0
      %1207 = vmatprep.subr.bf16.mxu0 0
      %1208 = vmatpush1.bf16.msra.mxu0 0
      %1209 = vmatprep.subr.bf16.mxu0 0
      %1210 = vmatpush1.bf16.msra.mxu0 0
      %1211 = vmatprep.subr.bf16.mxu0 0
      %1212 = vmatpush1.bf16.msra.mxu0 0
      %1213 = vmatprep.subr.bf16.mxu0 0
      %1214 = vmatpush1.bf16.msra.mxu0 0
      %1215 = vmatprep.subr.bf16.mxu0 0
      %1216 = vmatpush1.bf16.msra.mxu0 0
      %1217 = vmatprep.subr.bf16.mxu0 0
      %1218 = vmatpush1.bf16.msra.mxu0 0
      %1219 = vmatprep.subr.bf16.mxu0 0
      %1220 = vmatpush1.bf16.msra.mxu0 0
      %1221 = vmatprep.subr.bf16.mxu0 0
      %1222 = vmatpush1.bf16.msra.mxu0 0
      %1223 = vmatprep.mubr.bf16.mxu0 0
      %1224 = vmatmul.mubr.bf16.gmra.mrb[0].mxu0 %v1189
      %v1225 = vpop.f32.mrb[0].mxu0
      %v1226 = vadd.f32 %v1186, %v1225
      %v1227 = vpop.f32.mrb[0].mxu0
      %v1228 = vpop.f32.mrb[0].mxu0
      %v1229 = vpop.f32.mrb[0].mxu0
      %1230 = vdwg.mxu0
      %1232 = vrot.lane.b32.xlu0 %v1226, 96
      %v1233 = vpop.permute.xlu0 %1232
      %1235 = vxpose.xlu0.b32.start [1/16] %v1233, 128
      %1236 = vxpose.xlu0.b32.cont [2/16] 0.0, 128
      %1237 = vxpose.xlu0.b32.cont [3/16] 0.0, 128
      %1238 = vxpose.xlu0.b32.cont [4/16] 0.0, 128
      %1239 = vxpose.xlu0.b32.cont [5/16] 0.0, 128
      %1240 = vxpose.xlu0.b32.cont [6/16] 0.0, 128
      %1241 = vxpose.xlu0.b32.cont [7/16] 0.0, 128
      %1242 = vxpose.xlu0.b32.cont [8/16] 0.0, 128
      %1243 = vxpose.xlu0.b32.cont [9/16] 0.0, 128
      %1244 = vxpose.xlu0.b32.cont [10/16] 0.0, 128
      %1245 = vxpose.xlu0.b32.cont [11/16] 0.0, 128
      %1246 = vxpose.xlu0.b32.cont [12/16] 0.0, 128
      %1247 = vxpose.xlu0.b32.cont [13/16] 0.0, 128
      %1248 = vxpose.xlu0.b32.cont [14/16] 0.0, 128
      %1249 = vxpose.xlu0.b32.cont [15/16] 0.0, 128
      %1250 = vxpose.xlu0.b32.end [16/16] 0.0, 128
      %v1251 = vpop.trf.xlu0
      %v1252 = vpop.trf.xlu0
      %v1253 = vpop.trf.xlu0
      %v1254 = vpop.trf.xlu0
      %v1255 = vpop.trf.xlu0
      %v1256 = vpop.trf.xlu0
      %v1257 = vpop.trf.xlu0
      %v1258 = vpop.trf.xlu0
      %v1259 = vpop.trf.xlu0
      %v1260 = vpop.trf.xlu0
      %v1261 = vpop.trf.xlu0
      %v1262 = vpop.trf.xlu0
      %v1263 = vpop.trf.xlu0
      %v1264 = vpop.trf.xlu0
      %v1265 = vpop.trf.xlu0
      %v1266 = vpop.trf.xlu0
      %v1267 = vpack.c.bf16 %v1226, %v1226
      %v1268 = vpack.c.bf16 %v1252, %v1251
      %v1270 = vsel %vm662, %v1267, 0
      %1272 = vmatprep.subr.bf16.mxu0 0
      %1273 = vmatpush1.bf16.msra.mxu0 %v1268
      %1274 = vmatprep.subr.bf16.mxu0 0
      %1275 = vmatpush1.bf16.msra.mxu0 0
      %1276 = vmatprep.subr.bf16.mxu0 0
      %1277 = vmatpush1.bf16.msra.mxu0 0
      %1278 = vmatprep.subr.bf16.mxu0 0
      %1279 = vmatpush1.bf16.msra.mxu0 0
      %1280 = vmatprep.subr.bf16.mxu0 0
      %1281 = vmatpush1.bf16.msra.mxu0 0
      %1282 = vmatprep.subr.bf16.mxu0 0
      %1283 = vmatpush1.bf16.msra.mxu0 0
      %1284 = vmatprep.subr.bf16.mxu0 0
      %1285 = vmatpush1.bf16.msra.mxu0 0
      %1286 = vmatprep.subr.bf16.mxu0 0
      %1287 = vmatpush1.bf16.msra.mxu0 0
      %1288 = vmatprep.subr.bf16.mxu0 0
      %1289 = vmatpush1.bf16.msra.mxu0 0
      %1290 = vmatprep.subr.bf16.mxu0 0
      %1291 = vmatpush1.bf16.msra.mxu0 0
      %1292 = vmatprep.subr.bf16.mxu0 0
      %1293 = vmatpush1.bf16.msra.mxu0 0
      %1294 = vmatprep.subr.bf16.mxu0 0
      %1295 = vmatpush1.bf16.msra.mxu0 0
      %1296 = vmatprep.subr.bf16.mxu0 0
      %1297 = vmatpush1.bf16.msra.mxu0 0
      %1298 = vmatprep.subr.bf16.mxu0 0
      %1299 = vmatpush1.bf16.msra.mxu0 0
      %1300 = vmatprep.subr.bf16.mxu0 0
      %1301 = vmatpush1.bf16.msra.mxu0 0
      %1302 = vmatprep.subr.bf16.mxu0 0
      %1303 = vmatpush1.bf16.msra.mxu0 0
      %1304 = vmatprep.mubr.bf16.mxu0 0
      %1305 = vmatmul.mubr.bf16.gmra.mrb[0].mxu0 %v1270
      %v1306 = vpop.f32.mrb[0].mxu0
      %v1307 = vadd.f32 0.0, %v1306
      %v1308 = vpop.f32.mrb[0].mxu0
      %v1309 = vpop.f32.mrb[0].mxu0
      %v1310 = vpop.f32.mrb[0].mxu0
      %1311 = vdwg.mxu0
      %v1312 = vmul.f32 %v1307, 0.25
      %v1313 = vadd.f32 %v1312, %v711
      %v1314 = vsel %vm714, %v1313, -inf
      %1315 = vmax.xlane.f32.xlu0 %v1314
      %v1316 = vpop.xlane.xlu0 %1315
      %v1317 = vsub.f32 %v1313, %v1316
      %v1318 = vmul.f32 %v1317, 1.442695
      %v1319 = vpow.pop %v1318
      %v1320 = vsel %vm714, %v1319, 0.0
      %1321 = vadd.xlane.f32.xlu0 %v1320
      %v1322 = vpop.xlane.xlu0 %1321
      %v1323 = vrcp.pop %v1322
      %v1324 = vmul.f32 %v1319, %v1323
      %v1325 = vpack.c.bf16 %v1324, %v1324
      %1327 = vrot.lane.b32.xlu0 %v1267, 64
      %v1328 = vpop.permute.xlu0 %1327
      %v1330 = vsel %vm714, %v1325, 0
      %v1333 = vsel %vm733, %v1328, 0
      %1335 = vmatprep.subr.bf16.mxu0 0
      %1336 = vmatpush1.bf16.msra.mxu0 %v1333
      %1337 = vmatprep.subr.bf16.mxu0 0
      %1338 = vmatpush1.bf16.msra.mxu0 0
      %1339 = vmatprep.subr.bf16.mxu0 0
      %1340 = vmatpush1.bf16.msra.mxu0 0
      %1341 = vmatprep.subr.bf16.mxu0 0
      %1342 = vmatpush1.bf16.msra.mxu0 0
      %1343 = vmatprep.subr.bf16.mxu0 0
      %1344 = vmatpush1.bf16.msra.mxu0 0
      %1345 = vmatprep.subr.bf16.mxu0 0
      %1346 = vmatpush1.bf16.msra.mxu0 0
      %1347 = vmatprep.subr.bf16.mxu0 0
      %1348 = vmatpush1.bf16.msra.mxu0 0
      %1349 = vmatprep.subr.bf16.mxu0 0
      %1350 = vmatpush1.bf16.msra.mxu0 0
      %1351 = vmatprep.subr.bf16.mxu0 0
      %1352 = vmatpush1.bf16.msra.mxu0 0
      %1353 = vmatprep.subr.bf16.mxu0 0
      %1354 = vmatpush1.bf16.msra.mxu0 0
      %1355 = vmatprep.subr.bf16.mxu0 0
      %1356 = vmatpush1.bf16.msra.mxu0 0
      %1357 = vmatprep.subr.bf16.mxu0 0
      %1358 = vmatpush1.bf16.msra.mxu0 0
      %1359 = vmatprep.subr.bf16.mxu0 0
      %1360 = vmatpush1.bf16.msra.mxu0 0
      %1361 = vmatprep.subr.bf16.mxu0 0
      %1362 = vmatpush1.bf16.msra.mxu0 0
      %1363 = vmatprep.subr.bf16.mxu0 0
      %1364 = vmatpush1.bf16.msra.mxu0 0
      %1365 = vmatprep.subr.bf16.mxu0 0
      %1366 = vmatpush1.bf16.msra.mxu0 0
      %1367 = vmatprep.mubr.bf16.mxu0 0
      %1368 = vmatmul.mubr.bf16.gmra.mrb[0].mxu0 %v1330
      %v1369 = vpop.f32.mrb[0].mxu0
      %v1370 = vadd.f32 0.0, %v1369
      %v1371 = vpop.f32.mrb[0].mxu0
      %v1372 = vpop.f32.mrb[0].mxu0
      %v1373 = vpop.f32.mrb[0].mxu0
      %1374 = vdwg.mxu0
      %1375 = vrot.lane.b32.xlu0 %v1226, 80
      %v1376 = vpop.permute.xlu0 %1375
      %1378 = vxpose.xlu0.b32.start [1/16] %v1376, 128
      %1379 = vxpose.xlu0.b32.cont [2/16] 0.0, 128
      %1380 = vxpose.xlu0.b32.cont [3/16] 0.0, 128
      %1381 = vxpose.xlu0.b32.cont [4/16] 0.0, 128
      %1382 = vxpose.xlu0.b32.cont [5/16] 0.0, 128
      %1383 = vxpose.xlu0.b32.cont [6/16] 0.0, 128
      %1384 = vxpose.xlu0.b32.cont [7/16] 0.0, 128
      %1385 = vxpose.xlu0.b32.cont [8/16] 0.0, 128
      %1386 = vxpose.xlu0.b32.cont [9/16] 0.0, 128
      %1387 = vxpose.xlu0.b32.cont [10/16] 0.0, 128
      %1388 = vxpose.xlu0.b32.cont [11/16] 0.0, 128
      %1389 = vxpose.xlu0.b32.cont [12/16] 0.0, 128
      %1390 = vxpose.xlu0.b32.cont [13/16] 0.0, 128
      %1391 = vxpose.xlu0.b32.cont [14/16] 0.0, 128
      %1392 = vxpose.xlu0.b32.cont [15/16] 0.0, 128
      %1393 = vxpose.xlu0.b32.end [16/16] 0.0, 128
      %v1394 = vpop.trf.xlu0
      %v1395 = vpop.trf.xlu0
      %v1396 = vpop.trf.xlu0
      %v1397 = vpop.trf.xlu0
      %v1398 = vpop.trf.xlu0
      %v1399 = vpop.trf.xlu0
      %v1400 = vpop.trf.xlu0
      %v1401 = vpop.trf.xlu0
      %v1402 = vpop.trf.xlu0
      %v1403 = vpop.trf.xlu0
      %v1404 = vpop.trf.xlu0
      %v1405 = vpop.trf.xlu0
      %v1406 = vpop.trf.xlu0
      %v1407 = vpop.trf.xlu0
      %v1408 = vpop.trf.xlu0
      %v1409 = vpop.trf.xlu0
      %v1410 = vpack.c.bf16 %v1395, %v1394
      %1411 = vrot.lane.b32.xlu0 %v1267, 112
      %v1412 = vpop.permute.xlu0 %1411
      %v1414 = vsel %vm662, %v1412, 0
      %1416 = vmatprep.subr.bf16.mxu0 0
      %1417 = vmatpush1.bf16.msra.mxu0 %v1410
      %1418 = vmatprep.subr.bf16.mxu0 0
      %1419 = vmatpush1.bf16.msra.mxu0 0
      %1420 = vmatprep.subr.bf16.mxu0 0
      %1421 = vmatpush1.bf16.msra.mxu0 0
      %1422 = vmatprep.subr.bf16.mxu0 0
      %1423 = vmatpush1.bf16.msra.mxu0 0
      %1424 = vmatprep.subr.bf16.mxu0 0
      %1425 = vmatpush1.bf16.msra.mxu0 0
      %1426 = vmatprep.subr.bf16.mxu0 0
      %1427 = vmatpush1.bf16.msra.mxu0 0
      %1428 = vmatprep.subr.bf16.mxu0 0
      %1429 = vmatpush1.bf16.msra.mxu0 0
      %1430 = vmatprep.subr.bf16.mxu0 0
      %1431 = vmatpush1.bf16.msra.mxu0 0
      %1432 = vmatprep.subr.bf16.mxu0 0
      %1433 = vmatpush1.bf16.msra.mxu0 0
      %1434 = vmatprep.subr.bf16.mxu0 0
      %1435 = vmatpush1.bf16.msra.mxu0 0
      %1436 = vmatprep.subr.bf16.mxu0 0
      %1437 = vmatpush1.bf16.msra.mxu0 0
      %1438 = vmatprep.subr.bf16.mxu0 0
      %1439 = vmatpush1.bf16.msra.mxu0 0
      %1440 = vmatprep.subr.bf16.mxu0 0
      %1441 = vmatpush1.bf16.msra.mxu0 0
      %1442 = vmatprep.subr.bf16.mxu0 0
      %1443 = vmatpush1.bf16.msra.mxu0 0
      %1444 = vmatprep.subr.bf16.mxu0 0
      %1445 = vmatpush1.bf16.msra.mxu0 0
      %1446 = vmatprep.subr.bf16.mxu0 0
      %1447 = vmatpush1.bf16.msra.mxu0 0
      %1448 = vmatprep.mubr.bf16.mxu0 0
      %1449 = vmatmul.mubr.bf16.gmra.mrb[0].mxu0 %v1414
      %v1450 = vpop.f32.mrb[0].mxu0
      %v1451 = vadd.f32 0.0, %v1450
      %v1452 = vpop.f32.mrb[0].mxu0
      %v1453 = vpop.f32.mrb[0].mxu0
      %v1454 = vpop.f32.mrb[0].mxu0
      %1455 = vdwg.mxu0
      %v1456 = vmul.f32 %v1451, 0.25
      %v1457 = vadd.f32 %v1456, %v711
      %v1458 = vsel %vm714, %v1457, -inf
      %1459 = vmax.xlane.f32.xlu0 %v1458
      %v1460 = vpop.xlane.xlu0 %1459
      %v1461 = vsub.f32 %v1457, %v1460
      %v1462 = vmul.f32 %v1461, 1.442695
      %v1463 = vpow.pop %v1462
      %v1464 = vsel %vm714, %v1463, 0.0
      %1465 = vadd.xlane.f32.xlu0 %v1464
      %v1466 = vpop.xlane.xlu0 %1465
      %v1467 = vrcp.pop %v1466
      %v1468 = vmul.f32 %v1463, %v1467
      %v1469 = vpack.c.bf16 %v1468, %v1468
      %1470 = vrot.lane.b32.xlu0 %v1267, 48
      %v1471 = vpop.permute.xlu0 %1470
      %v1473 = vsel %vm714, %v1469, 0
      %v1476 = vsel %vm733, %v1471, 0
      %1478 = vmatprep.subr.bf16.mxu0 0
      %1479 = vmatpush1.bf16.msra.mxu0 %v1476
      %1480 = vmatprep.subr.bf16.mxu0 0
      %1481 = vmatpush1.bf16.msra.mxu0 0
      %1482 = vmatprep.subr.bf16.mxu0 0
      %1483 = vmatpush1.bf16.msra.mxu0 0
      %1484 = vmatprep.subr.bf16.mxu0 0
      %1485 = vmatpush1.bf16.msra.mxu0 0
      %1486 = vmatprep.subr.bf16.mxu0 0
      %1487 = vmatpush1.bf16.msra.mxu0 0
      %1488 = vmatprep.subr.bf16.mxu0 0
      %1489 = vmatpush1.bf16.msra.mxu0 0
      %1490 = vmatprep.subr.bf16.mxu0 0
      %1491 = vmatpush1.bf16.msra.mxu0 0
      %1492 = vmatprep.subr.bf16.mxu0 0
      %1493 = vmatpush1.bf16.msra.mxu0 0
      %1494 = vmatprep.subr.bf16.mxu0 0
      %1495 = vmatpush1.bf16.msra.mxu0 0
      %1496 = vmatprep.subr.bf16.mxu0 0
      %1497 = vmatpush1.bf16.msra.mxu0 0
      %1498 = vmatprep.subr.bf16.mxu0 0
      %1499 = vmatpush1.bf16.msra.mxu0 0
      %1500 = vmatprep.subr.bf16.mxu0 0
      %1501 = vmatpush1.bf16.msra.mxu0 0
      %1502 = vmatprep.subr.bf16.mxu0 0
      %1503 = vmatpush1.bf16.msra.mxu0 0
      %1504 = vmatprep.subr.bf16.mxu0 0
      %1505 = vmatpush1.bf16.msra.mxu0 0
      %1506 = vmatprep.subr.bf16.mxu0 0
      %1507 = vmatpush1.bf16.msra.mxu0 0
      %1508 = vmatprep.subr.bf16.mxu0 0
      %1509 = vmatpush1.bf16.msra.mxu0 0
      %1510 = vmatprep.mubr.bf16.mxu0 0
      %1511 = vmatmul.mubr.bf16.gmra.mrb[0].mxu0 %v1473
      %v1512 = vpop.f32.mrb[0].mxu0
      %v1513 = vadd.f32 0.0, %v1512
      %v1514 = vpop.f32.mrb[0].mxu0
      %v1515 = vpop.f32.mrb[0].mxu0
      %v1516 = vpop.f32.mrb[0].mxu0
      %1517 = vdwg.mxu0
      %1519 = vrot.lane.b32.xlu0 %v1513, 16
      %v1520 = vpop.permute.xlu0 %1519
      %v1522 = vsel %vm662, %v1370, %v1520
      %s1523 = scalar_lea.vmem %s6, 32
      %v1524 = vld [vmem:[%s1523] sm:$0xff]
      %v1525 = vld [vmem:[%s1523 + $0x8] sm:$0xff]
      %v1526 = vld [vmem:[%s1523 + $0x10] sm:$0xff]
      %v1527 = vld [vmem:[%s1523 + $0x18] sm:$0xff]
      %v1528 = vpack.c.bf16 %v1522, %v1522
      %v1529 = vpack.c.bf16 %v1525, %v1524
      %v1530 = vpack.c.bf16 %v1527, %v1526
      %s1531 = scalar_lea.vmem %s7, 1
      %v1532 = vld [vmem:[%s1531] sm:$0x1]
      %v1534 = vlaneseq
      %v1535 = vshrl.u32 %v1534, 7
      %v1536 = vsub.s32 0, %v1535
      %v1537 = vrot.slane %v1532, %v1536
      %v1540 = vsel %vm535, %v1528, 0
      %1542 = vmatprep.subr.bf16.mxu0 0
      %1543 = vmatpush1.bf16.msra.mxu0 %v1529
      %1544 = vmatprep.subr.bf16.mxu0 0
      %1545 = vmatpush1.bf16.msra.mxu0 %v1530
      %1546 = vmatprep.subr.bf16.mxu0 0
      %1547 = vmatpush1.bf16.msra.mxu0 0
      %1548 = vmatprep.subr.bf16.mxu0 0
      %1549 = vmatpush1.bf16.msra.mxu0 0
      %1550 = vmatprep.subr.bf16.mxu0 0
      %1551 = vmatpush1.bf16.msra.mxu0 0
      %1552 = vmatprep.subr.bf16.mxu0 0
      %1553 = vmatpush1.bf16.msra.mxu0 0
      %1554 = vmatprep.subr.bf16.mxu0 0
      %1555 = vmatpush1.bf16.msra.mxu0 0
      %1556 = vmatprep.subr.bf16.mxu0 0
      %1557 = vmatpush1.bf16.msra.mxu0 0
      %1558 = vmatprep.subr.bf16.mxu0 0
      %1559 = vmatpush1.bf16.msra.mxu0 0
      %1560 = vmatprep.subr.bf16.mxu0 0
      %1561 = vmatpush1.bf16.msra.mxu0 0
      %1562 = vmatprep.subr.bf16.mxu0 0
      %1563 = vmatpush1.bf16.msra.mxu0 0
      %1564 = vmatprep.subr.bf16.mxu0 0
      %1565 = vmatpush1.bf16.msra.mxu0 0
      %1566 = vmatprep.subr.bf16.mxu0 0
      %1567 = vmatpush1.bf16.msra.mxu0 0
      %1568 = vmatprep.subr.bf16.mxu0 0
      %1569 = vmatpush1.bf16.msra.mxu0 0
      %1570 = vmatprep.subr.bf16.mxu0 0
      %1571 = vmatpush1.bf16.msra.mxu0 0
      %1572 = vmatprep.subr.bf16.mxu0 0
      %1573 = vmatpush1.bf16.msra.mxu0 0
      %1574 = vmatprep.mubr.bf16.mxu0 0
      %1575 = vmatmul.mubr.bf16.gmra.mrb[0].mxu0 %v1540
      %v1576 = vpop.f32.mrb[0].mxu0
      %v1577 = vadd.f32 %v1537, %v1576
      %v1578 = vpop.f32.mrb[0].mxu0
      %v1579 = vpop.f32.mrb[0].mxu0
      %v1580 = vpop.f32.mrb[0].mxu0
      %1581 = vdwg.mxu0
      %v1582 = vadd.f32 %v1171, %v1577
      %s1583 = scalar_lea.vmem %s8, 1
      %v1584 = vld [vmem:[%s1583] sm:$0x1]
      %s1585 = scalar_lea.vmem %s9, 1
      %v1586 = vld [vmem:[%s1585] sm:$0x1]
      %v1587 = vsel %vm535, %v1582, 0.0
      %1588 = vadd.xlane.f32.xlu0 %v1587
      %v1589 = vpop.xlane.xlu0 %1588
      %v1590 = vmul.f32 %v1589, %v539
      %v1591 = vsub.f32 %v1582, %v1590
      %v1592 = vmul.f32 %v1591, %v1591
      %v1593 = vsel %vm535, %v1592, 0.0
      %1594 = vadd.xlane.f32.xlu0 %v1593
      %v1595 = vpop.xlane.xlu0 %1594
      %v1596 = vmul.f32 %v1595, %v539
      %v1597 = vadd.f32 %v1596, 1e-12
      %v1598 = vrsqrt.pop %v1597
      %v1599 = vmul.f32 %v1591, %v1598
      %v1601 = vlaneseq
      %v1602 = vshrl.u32 %v1601, 7
      %v1603 = vsub.s32 0, %v1602
      %v1604 = vrot.slane %v1584, %v1603
      %v1606 = vmul.f32 %v1599, %v1604
      %v1608 = vlaneseq
      %v1609 = vshrl.u32 %v1608, 7
      %v1610 = vsub.s32 0, %v1609
      %v1611 = vrot.slane %v1586, %v1610
      %v1613 = vadd.f32 %v1606, %v1611
      %s1614 = scalar_lea.vmem %s10, 32
      %v1615 = vld [vmem:[%s1614] sm:$0xff]
      %v1616 = vld [vmem:[%s1614 + $0x8] sm:$0xff]
      %v1617 = vld [vmem:[%s1614 + $0x10] sm:$0xff]
      %v1618 = vld [vmem:[%s1614 + $0x18] sm:$0xff]
      %v1619 = vpack.c.bf16 %v1613, %v1613
      %v1620 = vpack.c.bf16 %v1616, %v1615
      %v1621 = vpack.c.bf16 %v1618, %v1617
      %s1622 = scalar_lea.vmem %s11, 1
      %v1623 = vld [vmem:[%s1622] sm:$0x1]
      %v1625 = vlaneseq
      %v1626 = vshrl.u32 %v1625, 7
      %v1627 = vsub.s32 0, %v1626
      %v1628 = vrot.slane %v1623, %v1627
      %v1631 = vsel %vm535, %v1619, 0
      %1633 = vmatprep.subr.bf16.mxu0 0
      %1634 = vmatpush1.bf16.msra.mxu0 %v1620
      %1635 = vmatprep.subr.bf16.mxu0 0
      %1636 = vmatpush1.bf16.msra.mxu0 %v1621
      %1637 = vmatprep.subr.bf16.mxu0 0
      %1638 = vmatpush1.bf16.msra.mxu0 0
      %1639 = vmatprep.subr.bf16.mxu0 0
      %1640 = vmatpush1.bf16.msra.mxu0 0
      %1641 = vmatprep.subr.bf16.mxu0 0
      %1642 = vmatpush1.bf16.msra.mxu0 0
      %1643 = vmatprep.subr.bf16.mxu0 0
      %1644 = vmatpush1.bf16.msra.mxu0 0
      %1645 = vmatprep.subr.bf16.mxu0 0
      %1646 = vmatpush1.bf16.msra.mxu0 0
      %1647 = vmatprep.subr.bf16.mxu0 0
      %1648 = vmatpush1.bf16.msra.mxu0 0
      %1649 = vmatprep.subr.bf16.mxu0 0
      %1650 = vmatpush1.bf16.msra.mxu0 0
      %1651 = vmatprep.subr.bf16.mxu0 0
      %1652 = vmatpush1.bf16.msra.mxu0 0
      %1653 = vmatprep.subr.bf16.mxu0 0
      %1654 = vmatpush1.bf16.msra.mxu0 0
      %1655 = vmatprep.subr.bf16.mxu0 0
      %1656 = vmatpush1.bf16.msra.mxu0 0
      %1657 = vmatprep.subr.bf16.mxu0 0
      %1658 = vmatpush1.bf16.msra.mxu0 0
      %1659 = vmatprep.subr.bf16.mxu0 0
      %1660 = vmatpush1.bf16.msra.mxu0 0
      %1661 = vmatprep.subr.bf16.mxu0 0
      %1662 = vmatpush1.bf16.msra.mxu0 0
      %1663 = vmatprep.subr.bf16.mxu0 0
      %1664 = vmatpush1.bf16.msra.mxu0 0
      %1665 = vmatprep.mubr.bf16.mxu0 0
      %1666 = vmatmul.mubr.bf16.gmra.mrb[0].mxu0 %v1631
      %v1667 = vpop.f32.mrb[0].mxu0
      %v1668 = vadd.f32 %v1628, %v1667
      %v1669 = vpop.f32.mrb[0].mxu0
      %v1670 = vpop.f32.mrb[0].mxu0
      %v1671 = vpop.f32.mrb[0].mxu0
      %1672 = vdwg.mxu0
      %v1673 = vmul.f32 %v1668, 0.5
      %v1674 = vmul.f32 %v1668, 0.044715
      %v1675 = vmul.f32 %v1674, %v1668
      %v1676 = vmul.f32 %v1675, %v1668
      %v1677 = vadd.f32 %v1668, %v1676
      %v1678 = vmul.f32 %v1677, 0.7978846
      %v1679 = vtanh.pop %v1678
      %v1680 = vadd.f32 %v1679, 1.0
      %v1681 = vmul.f32 %v1673, %v1680
      %s1682 = scalar_lea.vmem %s12, 64
      %v1683 = vld [vmem:[%s1682] sm:$0xff]
      %v1684 = vld [vmem:[%s1682 + $0x8] sm:$0xff]
      %v1685 = vld [vmem:[%s1682 + $0x10] sm:$0xff]
      %v1686 = vld [vmem:[%s1682 + $0x18] sm:$0xff]
      %v1687 = vld [vmem:[%s1682 + $0x20] sm:$0xff]
      %v1688 = vld [vmem:[%s1682 + $0x28] sm:$0xff]
      %v1689 = vld [vmem:[%s1682 + $0x30] sm:$0xff]
      %v1690 = vld [vmem:[%s1682 + $0x38] sm:$0xff]
      %v1691 = vpack.c.bf16 %v1681, %v1681
      %v1692 = vpack.c.bf16 %v1684, %v1683
      %v1693 = vpack.c.bf16 %v1686, %v1685
      %v1694 = vpack.c.bf16 %v1688, %v1687
      %v1695 = vpack.c.bf16 %v1690, %v1689
      %s1696 = scalar_lea.vmem %s13, 1
      %v1697 = vld [vmem:[%s1696] sm:$0x1]
      %v1699 = vlaneseq
      %v1700 = vshrl.u32 %v1699, 7
      %v1701 = vsub.s32 0, %v1700
      %v1702 = vrot.slane %v1697, %v1701
      %v1705 = vsel %vm1098, %v1691, 0
      %1707 = vmatprep.subr.bf16.mxu0 0
      %1708 = vmatpush1.bf16.msra.mxu0 %v1692
      %1709 = vmatprep.subr.bf16.mxu0 0
      %1710 = vmatpush1.bf16.msra.mxu0 %v1693
      %1711 = vmatprep.subr.bf16.mxu0 0
      %1712 = vmatpush1.bf16.msra.mxu0 %v1694
      %1713 = vmatprep.subr.bf16.mxu0 0
      %1714 = vmatpush1.bf16.msra.mxu0 %v1695
      %1715 = vmatprep.subr.bf16.mxu0 0
      %1716 = vmatpush1.bf16.msra.mxu0 0
      %1717 = vmatprep.subr.bf16.mxu0 0
      %1718 = vmatpush1.bf16.msra.mxu0 0
      %1719 = vmatprep.subr.bf16.mxu0 0
      %1720 = vmatpush1.bf16.msra.mxu0 0
      %1721 = vmatprep.subr.bf16.mxu0 0
      %1722 = vmatpush1.bf16.msra.mxu0 0
      %1723 = vmatprep.subr.bf16.mxu0 0
      %1724 = vmatpush1.bf16.msra.mxu0 0
      %1725 = vmatprep.subr.bf16.mxu0 0
      %1726 = vmatpush1.bf16.msra.mxu0 0
      %1727 = vmatprep.subr.bf16.mxu0 0
      %1728 = vmatpush1.bf16.msra.mxu0 0
      %1729 = vmatprep.subr.bf16.mxu0 0
      %1730 = vmatpush1.bf16.msra.mxu0 0
      %1731 = vmatprep.subr.bf16.mxu0 0
      %1732 = vmatpush1.bf16.msra.mxu0 0
      %1733 = vmatprep.subr.bf16.mxu0 0
      %1734 = vmatpush1.bf16.msra.mxu0 0
      %1735 = vmatprep.subr.bf16.mxu0 0
      %1736 = vmatpush1.bf16.msra.mxu0 0
      %1737 = vmatprep.subr.bf16.mxu0 0
      %1738 = vmatpush1.bf16.msra.mxu0 0
      %1739 = vmatprep.mubr.bf16.mxu0 0
      %1740 = vmatmul.mubr.bf16.gmra.mrb[0].mxu0 %v1705
      %v1741 = vpop.f32.mrb[0].mxu0
      %v1742 = vadd.f32 %v1702, %v1741
      %v1743 = vpop.f32.mrb[0].mxu0
      %v1744 = vpop.f32.mrb[0].mxu0
      %v1745 = vpop.f32.mrb[0].mxu0
      %1746 = vdwg.mxu0
      %v1747 = vadd.f32 %v1613, %v1742
      %s1748 = scalar_lea.vmem %s14, 1
      %v1749 = vld [vmem:[%s1748] sm:$0x1]
      %s1750 = scalar_lea.vmem %s15, 1
      %v1751 = vld [vmem:[%s1750] sm:$0x1]
      %v1752 = vsel %vm535, %v1747, 0.0
      %1753 = vadd.xlane.f32.xlu0 %v1752
      %v1754 = vpop.xlane.xlu0 %1753
      %v1755 = vmul.f32 %v1754, %v539
      %v1756 = vsub.f32 %v1747, %v1755
      %v1757 = vmul.f32 %v1756, %v1756
      %v1758 = vsel %vm535, %v1757, 0.0
      %1759 = vadd.xlane.f32.xlu0 %v1758
      %v1760 = vpop.xlane.xlu0 %1759
      %v1761 = vmul.f32 %v1760, %v539
      %v1762 = vadd.f32 %v1761, 1e-12
      %v1763 = vrsqrt.pop %v1762
      %v1764 = vmul.f32 %v1756, %v1763
      %v1766 = vlaneseq
      %v1767 = vshrl.u32 %v1766, 7
      %v1768 = vsub.s32 0, %v1767
      %v1769 = vrot.slane %v1749, %v1768
      %v1771 = vmul.f32 %v1764, %v1769
      %v1773 = vlaneseq
      %v1774 = vshrl.u32 %v1773, 7
      %v1775 = vsub.s32 0, %v1774
      %v1776 = vrot.slane %v1751, %v1775
      %v1778 = vadd.f32 %v1771, %v1776
      %1779 = vst.msk [vmem:[%s530] sm:$0xff] %vm535, %v1778
      %p1780 = scmp.lt.s32.totalorder %s27, 1
      %s1781 = scalar_select %p1780, %s27, 1
      %s1782 = smul.addr %s1781, 8
      %s1783 = scalar_lea.vmem %s16, %s1782
      // Predicated region
      $region85: #{bert_classifier_forward.2} parent=83 // pred_check
        %p1784 = pneg %p391
      $region86: #{bert_classifier_forward.2} parent=83 // pred_check_branch
        %1786 = sbr.rel (%p1784) target = $region88
      $region87: #{bert_classifier_forward.2} parent=83 // pred_region
        _
      $region88: #{bert_classifier_forward.2} parent=83 // pred_fallthru
        _
    $region84: #{bert_classifier_forward.2} parent=5 // pred_fallthru
      _
    %p1787 = scmp.le.s32.totalorder 2, %s22
    // Predicated region
    $region89: #{bert_classifier_forward.2} parent=5 // pred_check
      %p1788 = pneg %p1787
    $region90: #{bert_classifier_forward.2} parent=5 // pred_check_branch
      %1790 = sbr.rel (%p1788) target = $region92
    $region91: #{bert_classifier_forward.2} parent=5 // pred_region
      %s1791 = ssub.s32 %s22, 2
      // Predicated region
      $region93: #{bert_classifier_forward.2} parent=91 // pred_check
        %p1792 = pneg %p397
      $region94: #{bert_classifier_forward.2} parent=91 // pred_check_branch
        %1794 = sbr.rel (%p1792) target = $region96
      $region95: #{bert_classifier_forward.2} parent=91 // pred_region
        %p1795 = scmp.lt.s32.totalorder %s28, 1
        %s1796 = scalar_select %p1795, %s28, 1
        %s1797 = smul.addr %s1796, 8
        %s1798 = scalar_lea.vmem %s16, %s1797
      $region96: #{bert_classifier_forward.2} parent=91 // pred_fallthru
        _
    $region92: #{bert_classifier_forward.2} parent=5 // pred_fallthru
      _
  $region6: #{bert_classifier_forward.2} parent=0 // loop_footer
    %s26 = sadd.s32 1, %s22
  $region7: #{bert_classifier_forward.2} parent=0 // loop_footer_branch
    %21 = sbr.rel target = $region3
  $region8: #{bert_classifier_forward.2} parent=0 // loop_exit
    _

</llo_original>
